<compile_context>
chip_gen: v7x
topology: tpu7x:2x2x1
jax: 0.10.0
libtpu: 0.0.40
codegen_flags: <defaults>
</compile_context>

<pallas_src>
import functools

import jax
import jax.numpy as jnp
from jax.experimental import pallas as pl
from jax.experimental.pallas import tpu as pltpu

LN_EPS = 1e-5  # PyTorch nn.LayerNorm default


# ----------------------------- in-kernel helpers -----------------------------
def _gelu(x):
    # tanh-form GELU -> single EUP tanh instead of a long VALU erf polynomial.
    # nn.GELU() default is the exact erf form; tanh matches it to ~1e-3 abs.
    c = 0.7978845608028654  # sqrt(2/pi)
    return 0.5 * x * (1.0 + jnp.tanh(c * (x + 0.044715 * x * x * x)))


def _layernorm(x, w, b):
    # x: (N, C) f32, w/b: (1, C) f32.  Biased variance, eps=1e-5 (PyTorch).
    mu = jnp.mean(x, axis=-1, keepdims=True)
    var = jnp.mean(jnp.square(x - mu), axis=-1, keepdims=True)
    return (x - mu) * jax.lax.rsqrt(var + LN_EPS) * w + b


# --------------------------------- fused kernel -------------------------------
def _vit_encoder_kernel(patches_ref, pew_ref, peb_ref, cls_ref,
                        n1w_ref, n1b_ref, qkvw_ref, qkvb_ref,
                        aprojw_ref, aprojb_ref, n2w_ref, n2b_ref,
                        fc1w_ref, fc1b_ref, fc2w_ref, fc2b_ref,
                        nw_ref, nb_ref,
                        o_ref, x_scr,
                        *, num_heads):
    d = pl.program_id(1)                      # transformer depth (arbitrary axis)
    n_tok, dim = x_scr.shape                  # (num_patches + 1, embed_dim)
    dh = dim // num_heads

    # --- depth step 0: patch-embed projection + cls token into resident scratch
    @pl.when(d == 0)
    def _embed():
        tok = jnp.dot(patches_ref[0], pew_ref[...],              # bf16 x bf16
                      preferred_element_type=jnp.float32) + peb_ref[...]
        x_scr[pl.ds(0, 1), :] = cls_ref[...]                     # cls token row
        x_scr[pl.ds(1, n_tok - 1), :] = tok
        # pos_drop / attn_drop / proj_drop / drop_path: p=0.0 or eval -> identity.
        # (The reference forward never adds pos_embed, so neither do we.)

    x = x_scr[...]                                               # (N, C) f32

    # ------------------------------ attention -------------------------------
    h1 = _layernorm(x, n1w_ref[0], n1b_ref[0])
    # qkv weight/bias already carry the attention scale on the q-slice
    # (folded host-side), so no in-kernel scaling is needed.
    qkv = jnp.dot(h1.astype(jnp.bfloat16), qkvw_ref[0],
                  preferred_element_type=jnp.float32) + qkvb_ref[0]   # (N, 3C)

    def to_heads(mat):                                           # (N, C)->(H, N, dh)
        return jnp.stack(
            [mat[:, h * dh:(h + 1) * dh] for h in range(num_heads)], axis=0)

    q = to_heads(qkv[:, 0:dim].astype(jnp.bfloat16))
    k = to_heads(qkv[:, dim:2 * dim].astype(jnp.bfloat16))
    v = to_heads(qkv[:, 2 * dim:3 * dim].astype(jnp.bfloat16))

    # Head-batched logits / p@v (single dot_general each, f32 accumulation).
    logits = jnp.einsum('hnd,hmd->hnm', q, k,
                        preferred_element_type=jnp.float32)          # (H, N, N)
    logits = logits - jnp.max(logits, axis=-1, keepdims=True)
    p = jnp.exp(logits)
    p = p * pl.reciprocal(jnp.sum(p, axis=-1, keepdims=True), approx=True)
    o_h = jnp.einsum('hnm,hmd->hnd', p.astype(jnp.bfloat16), v,
                     preferred_element_type=jnp.float32)             # (H, N, dh)

    # Concat heads once, then ONE (N,C)@(C,C) projection matmul.
    attn = jnp.concatenate([o_h[h] for h in range(num_heads)], axis=-1)
    attn = jnp.dot(attn.astype(jnp.bfloat16), aprojw_ref[0],
                   preferred_element_type=jnp.float32) + aprojb_ref[0]
    x = x + attn                                                 # residual 1

    # --------------------------------- MLP -----------------------------------
    h2 = _layernorm(x, n2w_ref[0], n2b_ref[0])
    m = jnp.dot(h2.astype(jnp.bfloat16), fc1w_ref[0],
                preferred_element_type=jnp.float32) + fc1b_ref[0]
    m = _gelu(m)
    m = jnp.dot(m.astype(jnp.bfloat16), fc2w_ref[0],
                preferred_element_type=jnp.float32) + fc2b_ref[0]
    x = x + m                                                    # residual 2

    x_scr[...] = x                                               # stay in VMEM

    # --- last depth step: final LayerNorm, write the (only) HBM output -------
    @pl.when(d == pl.num_programs(1) - 1)
    def _final():
        o_ref[0] = _layernorm(x, nw_ref[...], nb_ref[...]).astype(o_ref.dtype)


# ------------------------------ pallas wrapper --------------------------------
def vit_encoder_forward(x, params, *, num_heads):
    # x: (B, Cin, H, W) NCHW, like the PyTorch module.
    B, Cin, H, W = x.shape
    ps = params["patch_size"]
    gh, gw = H // ps, W // ps
    P = gh * gw
    E = params["proj_w"].shape[1]
    N = P + 1
    blocks = params["blocks"]
    depth = blocks["qkv_w"].shape[0]
    scale = (E // num_heads) ** -0.5

    # Non-overlapping patch extraction: pure data movement -> plain JAX glue.
    # Conv2d(kernel=stride=patch) == matmul over the flattened (c, ph, pw) vec.
    patches = (x.reshape(B, Cin, gh, ps, gw, ps)
                 .transpose(0, 2, 4, 1, 3, 5)
                 .reshape(B, P, Cin * ps * ps)).astype(jnp.bfloat16)

    bf16 = lambda a: a.astype(jnp.bfloat16)   # MXU operands in bf16, f32 accum

    # Fold the attention scale into the q-slice of the qkv weight & bias
    # (one-time constant rescale on the host; removes an N*C mul per layer).
    scale_row = jnp.concatenate(
        [jnp.full((E,), scale, jnp.float32), jnp.ones((2 * E,), jnp.float32)])
    qkv_w_s = blocks["qkv_w"] * scale_row          # (depth, E, 3E)
    qkv_b_s = blocks["qkv_b"] * scale_row          # (depth, 1, 3E)

    def dspec(shape):   # per-depth stacked param: block (1, ...), index = d
        return pl.BlockSpec((1,) + shape[1:],
                            lambda b, d: (d,) + (0,) * (len(shape) - 1))

    def cspec(shape):   # shared (depth-constant) param
        return pl.BlockSpec(shape, lambda b, d: (0,) * len(shape))

    kernel = functools.partial(_vit_encoder_kernel, num_heads=num_heads)

    operands = (
        patches,
        bf16(params["proj_w"]), params["proj_b"], params["cls_token"],
        blocks["n1_w"], blocks["n1_b"],
        bf16(qkv_w_s), qkv_b_s,
        bf16(blocks["proj_w"]), blocks["proj_b"],
        blocks["n2_w"], blocks["n2_b"],
        bf16(blocks["fc1_w"]), blocks["fc1_b"],
        bf16(blocks["fc2_w"]), blocks["fc2_b"],
        params["norm_w"], params["norm_b"],
    )
    in_specs = [
        pl.BlockSpec((1, P, patches.shape[-1]), lambda b, d: (b, 0, 0)),
        cspec(params["proj_w"].shape), cspec(params["proj_b"].shape),
        cspec(params["cls_token"].shape),
        dspec(blocks["n1_w"].shape), dspec(blocks["n1_b"].shape),
        dspec(blocks["qkv_w"].shape), dspec(blocks["qkv_b"].shape),
        dspec(blocks["proj_w"].shape), dspec(blocks["proj_b"].shape),
        dspec(blocks["n2_w"].shape), dspec(blocks["n2_b"].shape),
        dspec(blocks["fc1_w"].shape), dspec(blocks["fc1_b"].shape),
        dspec(blocks["fc2_w"].shape), dspec(blocks["fc2_b"].shape),
        cspec(params["norm_w"].shape), cspec(params["norm_b"].shape),
    ]

    return pl.pallas_call(
        kernel,
        out_shape=jax.ShapeDtypeStruct((B, N, E), x.dtype),
        grid=(B, depth),
        in_specs=in_specs,
        out_specs=pl.BlockSpec((1, N, E), lambda b, d: (b, 0, 0)),
        scratch_shapes=[pltpu.VMEM((N, E), jnp.float32)],   # resident activations
        compiler_params=pltpu.CompilerParams(
            dimension_semantics=("parallel", "arbitrary"),
            vmem_limit_bytes=64 * 1024 * 1024,   # headroom for real ViT dims
        ),
    )(*operands)


# --------------------------- pure-JAX reference (f32) --------------------------
def vit_encoder_reference(x, params, *, num_heads):
    ps = params["patch_size"]
    B, Cin, H, W = x.shape
    gh, gw = H // ps, W // ps
    P = gh * gw
    E = params["proj_w"].shape[1]
    blocks = params["blocks"]
    depth = blocks["qkv_w"].shape[0]
    dh = E // num_heads
    scale = dh ** -0.5

    patches = (x.reshape(B, Cin, gh, ps, gw, ps)
                 .transpose(0, 2, 4, 1, 3, 5)
                 .reshape(B, P, Cin * ps * ps))
    tok = patches @ params["proj_w"] + params["proj_b"]
    cls = jnp.broadcast_to(params["cls_token"][None], (B, 1, E))
    xx = jnp.concatenate([cls, tok], axis=1)                    # (B, N, E)

    def ln(z, w, b):
        mu = z.mean(-1, keepdims=True)
        var = ((z - mu) ** 2).mean(-1, keepdims=True)
        return (z - mu) / jnp.sqrt(var + LN_EPS) * w + b

    def heads(m):                                               # (B,N,E)->(B,H,N,dh)
        return m.reshape(B, -1, num_heads, dh).transpose(0, 2, 1, 3)

    for d in range(depth):
        h1 = ln(xx, blocks["n1_w"][d], blocks["n1_b"][d])
        qkv = h1 @ blocks["qkv_w"][d] + blocks["qkv_b"][d]
        q = heads(qkv[..., 0:E]) * scale
        k = heads(qkv[..., E:2 * E])
        v = heads(qkv[..., 2 * E:3 * E])
        a = jax.nn.softmax(jnp.einsum('bhnd,bhmd->bhnm', q, k), axis=-1)
        o = jnp.einsum('bhnm,bhmd->bhnd', a, v)
        o = o.transpose(0, 2, 1, 3).reshape(B, -1, E)
        o = o @ blocks["proj_w"][d] + blocks["proj_b"][d]
        xx = xx + o
        h2 = ln(xx, blocks["n2_w"][d], blocks["n2_b"][d])
        m = _gelu(h2 @ blocks["fc1_w"][d] + blocks["fc1_b"][d])
        m = m @ blocks["fc2_w"][d] + blocks["fc2_b"][d]
        xx = xx + m
    return ln(xx, params["norm_w"], params["norm_b"])


# ------------------------------- parameter init --------------------------------
def init_params(key, *, img_size, patch_size, in_channels, embed_dim, depth,
                num_heads, mlp_ratio):
    del num_heads
    grid = img_size // patch_size
    num_patches = grid * grid
    patch_dim = in_channels * patch_size * patch_size
    hidden = int(embed_dim * mlp_ratio)

    def nrm(k, shape, scl=0.02):
        return scl * jax.random.normal(k, shape, jnp.float32)

    keys = jax.random.split(key, 12)
    return {
        "patch_size": patch_size,
        "proj_w": nrm(keys[0], (patch_dim, embed_dim)),
        "proj_b": nrm(keys[1], (1, embed_dim)),
        "cls_token": nrm(keys[2], (1, embed_dim)),
        # Declared like the nn.Parameter but (matching the reference forward,
        # which only applies pos_drop) never added to the tokens.
        "pos_embed": nrm(keys[3], (1, num_patches + 1, embed_dim)),
        "norm_w": jnp.ones((1, embed_dim), jnp.float32),
        "norm_b": jnp.zeros((1, embed_dim), jnp.float32),
        "blocks": {   # stacked along a leading depth axis, streamed per grid step
            "n1_w": jnp.ones((depth, 1, embed_dim), jnp.float32),
            "n1_b": jnp.zeros((depth, 1, embed_dim), jnp.float32),
            "qkv_w": nrm(keys[4], (depth, embed_dim, 3 * embed_dim)),
            "qkv_b": nrm(keys[5], (depth, 1, 3 * embed_dim)),   # qkv_bias=True
            "proj_w": nrm(keys[6], (depth, embed_dim, embed_dim)),
            "proj_b": nrm(keys[7], (depth, 1, embed_dim)),
            "n2_w": jnp.ones((depth, 1, embed_dim), jnp.float32),
            "n2_b": jnp.zeros((depth, 1, embed_dim), jnp.float32),
            "fc1_w": nrm(keys[8], (depth, embed_dim, hidden)),
            "fc1_b": nrm(keys[9], (depth, 1, hidden)),
            "fc2_w": nrm(keys[10], (depth, hidden, embed_dim)),
            "fc2_b": nrm(keys[11], (depth, 1, embed_dim)),
        },
    }


# ------------------------------------ main --------------------------------------
if __name__ == "__main__":
    B, Cin, HW = 2, 4, 16
    patch_size = 4
    embed_dim, depth, num_heads, mlp_ratio = 32, 2, 4, 4.0

    key = jax.random.PRNGKey(0)
    kx, kp = jax.random.split(key)
    x = jax.random.normal(kx, (B, Cin, HW, HW), jnp.float32)

    params = init_params(kp, img_size=HW, patch_size=patch_size,
                         in_channels=Cin, embed_dim=embed_dim, depth=depth,
                         num_heads=num_heads, mlp_ratio=mlp_ratio)

    out = vit_encoder_forward(x, params, num_heads=num_heads)
    out = jax.block_until_ready(out)

    num_patches = (HW // patch_size) ** 2
    assert out.shape == (B, num_patches + 1, embed_dim), out.shape
    assert bool(jnp.isfinite(out).all())

    # Correctness check vs a pure-JAX f32 reference (loose tol: kernel runs
    # MXU matmuls with bf16 operands / f32 accumulation + approx reciprocal).
    ref = jax.block_until_ready(vit_encoder_reference(x, params, num_heads=num_heads))
    max_err = float(jnp.max(jnp.abs(out - ref)))
    assert max_err < 7e-2, f"max abs error vs reference: {max_err}"

    print("KERNEL_OK")
</pallas_src>

<mosaic_0001>
module attributes {stable_mosaic.version = 11 : i64} {
  func.func @_vit_encoder_kernel(%arg0: i32, %arg1: i32, %arg2: memref<1x16x64xbf16, #tpu.memory_space<vmem>>, %arg3: memref<64x32xbf16, #tpu.memory_space<vmem>>, %arg4: memref<1x32xf32, #tpu.memory_space<vmem>>, %arg5: memref<1x32xf32, #tpu.memory_space<vmem>>, %arg6: memref<1x1x32xf32, #tpu.memory_space<vmem>>, %arg7: memref<1x1x32xf32, #tpu.memory_space<vmem>>, %arg8: memref<1x32x96xbf16, #tpu.memory_space<vmem>>, %arg9: memref<1x1x96xf32, #tpu.memory_space<vmem>>, %arg10: memref<1x32x32xbf16, #tpu.memory_space<vmem>>, %arg11: memref<1x1x32xf32, #tpu.memory_space<vmem>>, %arg12: memref<1x1x32xf32, #tpu.memory_space<vmem>>, %arg13: memref<1x1x32xf32, #tpu.memory_space<vmem>>, %arg14: memref<1x32x128xbf16, #tpu.memory_space<vmem>>, %arg15: memref<1x1x128xf32, #tpu.memory_space<vmem>>, %arg16: memref<1x128x32xbf16, #tpu.memory_space<vmem>>, %arg17: memref<1x1x32xf32, #tpu.memory_space<vmem>>, %arg18: memref<1x32xf32, #tpu.memory_space<vmem>>, %arg19: memref<1x32xf32, #tpu.memory_space<vmem>>, %arg20: memref<1x17x32xf32, #tpu.memory_space<vmem>>, %arg21: memref<17x32xf32, #tpu.memory_space<vmem>>) attributes {dimension_semantics = [#tpu.dimension_semantics<parallel>, #tpu.dimension_semantics<arbitrary>], iteration_bounds = array<i64: 2, 2>, scalar_prefetch = 0 : i64, scratch_operands = 1 : i64, tpu.core_type = #tpu.core_type<tc>, window_params = [{transform_indices = @transform_0, window_bounds = array<i64: 1, 16, 64>}, {pipeline_mode = #tpu.pipeline_mode<synchronous>, transform_indices = @transform_1, window_bounds = array<i64: 64, 32>}, {pipeline_mode = #tpu.pipeline_mode<synchronous>, transform_indices = @transform_2, window_bounds = array<i64: 1, 32>}, {pipeline_mode = #tpu.pipeline_mode<synchronous>, transform_indices = @transform_3, window_bounds = array<i64: 1, 32>}, {transform_indices = @transform_4, window_bounds = array<i64: 1, 1, 32>}, {transform_indices = @transform_5, window_bounds = array<i64: 1, 1, 32>}, {transform_indices = @transform_6, window_bounds = array<i64: 1, 32, 96>}, {transform_indices = @transform_7, window_bounds = array<i64: 1, 1, 96>}, {transform_indices = @transform_8, window_bounds = array<i64: 1, 32, 32>}, {transform_indices = @transform_9, window_bounds = array<i64: 1, 1, 32>}, {transform_indices = @transform_10, window_bounds = array<i64: 1, 1, 32>}, {transform_indices = @transform_11, window_bounds = array<i64: 1, 1, 32>}, {transform_indices = @transform_12, window_bounds = array<i64: 1, 32, 128>}, {transform_indices = @transform_13, window_bounds = array<i64: 1, 1, 128>}, {transform_indices = @transform_14, window_bounds = array<i64: 1, 128, 32>}, {transform_indices = @transform_15, window_bounds = array<i64: 1, 1, 32>}, {pipeline_mode = #tpu.pipeline_mode<synchronous>, transform_indices = @transform_16, window_bounds = array<i64: 1, 32>}, {pipeline_mode = #tpu.pipeline_mode<synchronous>, transform_indices = @transform_17, window_bounds = array<i64: 1, 32>}, {transform_indices = @transform_18, window_bounds = array<i64: 1, 17, 32>}]} {
    %c0_i32 = arith.constant 0 : i32
    %0 = arith.cmpi eq, %arg1, %c0_i32 : i32
    %1 = arith.extui %0 : i1 to i32
    %c0_i32_0 = arith.constant 0 : i32
    %2 = arith.cmpi ne, %1, %c0_i32_0 : i32
    scf.if %2 {
      %c0_62 = arith.constant 0 : index
      %c0_63 = arith.constant 0 : index
      %c0_64 = arith.constant 0 : index
      %162 = vector.load %arg2[%c0_62, %c0_63, %c0_64] : memref<1x16x64xbf16, #tpu.memory_space<vmem>>, vector<1x16x64xbf16>
      %163 = vector.shape_cast %162 : vector<1x16x64xbf16> to vector<16x64xbf16>
      %c0_65 = arith.constant 0 : index
      %c0_66 = arith.constant 0 : index
      %164 = vector.load %arg3[%c0_65, %c0_66] : memref<64x32xbf16, #tpu.memory_space<vmem>>, vector<64x32xbf16>
      %cst_67 = arith.constant dense<0.000000e+00> : vector<16x32xf32>
      %165 = tpu.matmul %163, %164, %cst_67 {dimension_numbers = #tpu.dot_dimension_numbers<[1], [0], [0], [1], [0, 0, 1, 1], [], []>} : vector<16x64xbf16>, vector<64x32xbf16>, vector<16x32xf32> -> vector<16x32xf32>
      %c0_68 = arith.constant 0 : index
      %c0_69 = arith.constant 0 : index
      %166 = vector.load %arg4[%c0_68, %c0_69] : memref<1x32xf32, #tpu.memory_space<vmem>>, vector<1x32xf32>
      %167 = vector.broadcast %166 : vector<1x32xf32> to vector<16x32xf32>
      %168 = arith.addf %165, %167 : vector<16x32xf32>
      %c0_70 = arith.constant 0 : index
      %c0_71 = arith.constant 0 : index
      %169 = vector.load %arg5[%c0_70, %c0_71] : memref<1x32xf32, #tpu.memory_space<vmem>>, vector<1x32xf32>
      %c0_72 = arith.constant 0 : index
      %c0_73 = arith.constant 0 : index
      %170 = vector.load %arg21[%c0_72, %c0_73] : memref<17x32xf32, #tpu.memory_space<vmem>>, vector<1x32xf32>
      tpu.vector_store %arg21[%c0_72, %c0_73], %169 {strides = array<i32>} : memref<17x32xf32, #tpu.memory_space<vmem>>, vector<1x32xf32>,
      %c1 = arith.constant 1 : index
      %c0_74 = arith.constant 0 : index
      %171 = vector.load %arg21[%c1, %c0_74] : memref<17x32xf32, #tpu.memory_space<vmem>>, vector<16x32xf32>
      tpu.vector_store %arg21[%c1, %c0_74], %168 {strides = array<i32>} : memref<17x32xf32, #tpu.memory_space<vmem>>, vector<16x32xf32>,
    } else {
    }
    %c0 = arith.constant 0 : index
    %c0_1 = arith.constant 0 : index
    %3 = vector.load %arg21[%c0, %c0_1] : memref<17x32xf32, #tpu.memory_space<vmem>>, vector<17x32xf32>
    %c0_2 = arith.constant 0 : index
    %c0_3 = arith.constant 0 : index
    %c0_4 = arith.constant 0 : index
    %4 = vector.load %arg6[%c0_2, %c0_3, %c0_4] : memref<1x1x32xf32, #tpu.memory_space<vmem>>, vector<1x1x32xf32>
    %5 = vector.shape_cast %4 : vector<1x1x32xf32> to vector<1x32xf32>
    %c0_5 = arith.constant 0 : index
    %c0_6 = arith.constant 0 : index
    %c0_7 = arith.constant 0 : index
    %6 = vector.load %arg7[%c0_5, %c0_6, %c0_7] : memref<1x1x32xf32, #tpu.memory_space<vmem>>, vector<1x1x32xf32>
    %7 = vector.shape_cast %6 : vector<1x1x32xf32> to vector<1x32xf32>
    %cst = arith.constant dense<0.000000e+00> : vector<17xf32>
    %8 = vector.multi_reduction <add>, %3, %cst [1] : vector<17x32xf32> to vector<17xf32>
    %9 = vector.shape_cast %8 : vector<17xf32> to vector<17x1xf32>
    %cst_8 = arith.constant 3.200000e+01 : f32
    %10 = vector.broadcast %cst_8 : f32 to vector<17x1xf32>
    %11 = arith.divf %9, %10 : vector<17x1xf32>
    %12 = vector.broadcast %11 : vector<17x1xf32> to vector<17x32xf32>
    %13 = arith.subf %3, %12 : vector<17x32xf32>
    %14 = arith.mulf %13, %13 : vector<17x32xf32>
    %cst_9 = arith.constant dense<0.000000e+00> : vector<17xf32>
    %15 = vector.multi_reduction <add>, %14, %cst_9 [1] : vector<17x32xf32> to vector<17xf32>
    %16 = vector.shape_cast %15 : vector<17xf32> to vector<17x1xf32>
    %cst_10 = arith.constant 3.200000e+01 : f32
    %17 = vector.broadcast %cst_10 : f32 to vector<17x1xf32>
    %18 = arith.divf %16, %17 : vector<17x1xf32>
    %19 = vector.broadcast %11 : vector<17x1xf32> to vector<17x32xf32>
    %20 = arith.subf %3, %19 : vector<17x32xf32>
    %cst_11 = arith.constant 9.99999974E-6 : f32
    %21 = vector.broadcast %cst_11 : f32 to vector<17x1xf32>
    %22 = arith.addf %18, %21 : vector<17x1xf32>
    %23 = math.rsqrt %22 : vector<17x1xf32>
    %24 = vector.broadcast %23 : vector<17x1xf32> to vector<17x32xf32>
    %25 = arith.mulf %20, %24 : vector<17x32xf32>
    %26 = vector.broadcast %5 : vector<1x32xf32> to vector<17x32xf32>
    %27 = arith.mulf %25, %26 : vector<17x32xf32>
    %28 = vector.broadcast %7 : vector<1x32xf32> to vector<17x32xf32>
    %29 = arith.addf %27, %28 : vector<17x32xf32>
    %30 = arith.truncf %29 : vector<17x32xf32> to vector<17x32xbf16>
    %c0_12 = arith.constant 0 : index
    %c0_13 = arith.constant 0 : index
    %c0_14 = arith.constant 0 : index
    %31 = vector.load %arg8[%c0_12, %c0_13, %c0_14] : memref<1x32x96xbf16, #tpu.memory_space<vmem>>, vector<1x32x96xbf16>
    %32 = vector.shape_cast %31 : vector<1x32x96xbf16> to vector<32x96xbf16>
    %cst_15 = arith.constant dense<0.000000e+00> : vector<17x96xf32>
    %33 = tpu.matmul %30, %32, %cst_15 {dimension_numbers = #tpu.dot_dimension_numbers<[1], [0], [0], [1], [0, 0, 1, 1], [], []>} : vector<17x32xbf16>, vector<32x96xbf16>, vector<17x96xf32> -> vector<17x96xf32>
    %c0_16 = arith.constant 0 : index
    %c0_17 = arith.constant 0 : index
    %c0_18 = arith.constant 0 : index
    %34 = vector.load %arg9[%c0_16, %c0_17, %c0_18] : memref<1x1x96xf32, #tpu.memory_space<vmem>>, vector<1x1x96xf32>
    %35 = vector.shape_cast %34 : vector<1x1x96xf32> to vector<1x96xf32>
    %36 = vector.broadcast %35 : vector<1x96xf32> to vector<17x96xf32>
    %37 = arith.addf %33, %36 : vector<17x96xf32>
    %38 = vector.extract_strided_slice %37 {offsets = [0, 0], sizes = [17, 32], strides = [1, 1]} : vector<17x96xf32> to vector<17x32xf32>
    %39 = arith.truncf %38 : vector<17x32xf32> to vector<17x32xbf16>
    %40 = vector.extract_strided_slice %39 {offsets = [0, 0], sizes = [17, 8], strides = [1, 1]} : vector<17x32xbf16> to vector<17x8xbf16>
    %41 = vector.extract_strided_slice %39 {offsets = [0, 8], sizes = [17, 8], strides = [1, 1]} : vector<17x32xbf16> to vector<17x8xbf16>
    %42 = vector.extract_strided_slice %39 {offsets = [0, 16], sizes = [17, 8], strides = [1, 1]} : vector<17x32xbf16> to vector<17x8xbf16>
    %43 = vector.extract_strided_slice %39 {offsets = [0, 24], sizes = [17, 8], strides = [1, 1]} : vector<17x32xbf16> to vector<17x8xbf16>
    %44 = vector.shape_cast %40 : vector<17x8xbf16> to vector<1x17x8xbf16>
    %45 = vector.shape_cast %41 : vector<17x8xbf16> to vector<1x17x8xbf16>
    %46 = vector.shape_cast %42 : vector<17x8xbf16> to vector<1x17x8xbf16>
    %47 = vector.shape_cast %43 : vector<17x8xbf16> to vector<1x17x8xbf16>
    %48 = tpu.concatenate %44, %45, %46, %47 in 0 : vector<1x17x8xbf16>, vector<1x17x8xbf16>, vector<1x17x8xbf16>, vector<1x17x8xbf16> -> vector<4x17x8xbf16>
    %49 = vector.extract_strided_slice %37 {offsets = [0, 32], sizes = [17, 32], strides = [1, 1]} : vector<17x96xf32> to vector<17x32xf32>
    %50 = arith.truncf %49 : vector<17x32xf32> to vector<17x32xbf16>
    %51 = vector.extract_strided_slice %50 {offsets = [0, 0], sizes = [17, 8], strides = [1, 1]} : vector<17x32xbf16> to vector<17x8xbf16>
    %52 = vector.extract_strided_slice %50 {offsets = [0, 8], sizes = [17, 8], strides = [1, 1]} : vector<17x32xbf16> to vector<17x8xbf16>
    %53 = vector.extract_strided_slice %50 {offsets = [0, 16], sizes = [17, 8], strides = [1, 1]} : vector<17x32xbf16> to vector<17x8xbf16>
    %54 = vector.extract_strided_slice %50 {offsets = [0, 24], sizes = [17, 8], strides = [1, 1]} : vector<17x32xbf16> to vector<17x8xbf16>
    %55 = vector.shape_cast %51 : vector<17x8xbf16> to vector<1x17x8xbf16>
    %56 = vector.shape_cast %52 : vector<17x8xbf16> to vector<1x17x8xbf16>
    %57 = vector.shape_cast %53 : vector<17x8xbf16> to vector<1x17x8xbf16>
    %58 = vector.shape_cast %54 : vector<17x8xbf16> to vector<1x17x8xbf16>
    %59 = tpu.concatenate %55, %56, %57, %58 in 0 : vector<1x17x8xbf16>, vector<1x17x8xbf16>, vector<1x17x8xbf16>, vector<1x17x8xbf16> -> vector<4x17x8xbf16>
    %60 = vector.extract_strided_slice %37 {offsets = [0, 64], sizes = [17, 32], strides = [1, 1]} : vector<17x96xf32> to vector<17x32xf32>
    %61 = arith.truncf %60 : vector<17x32xf32> to vector<17x32xbf16>
    %62 = vector.extract_strided_slice %61 {offsets = [0, 0], sizes = [17, 8], strides = [1, 1]} : vector<17x32xbf16> to vector<17x8xbf16>
    %63 = vector.extract_strided_slice %61 {offsets = [0, 8], sizes = [17, 8], strides = [1, 1]} : vector<17x32xbf16> to vector<17x8xbf16>
    %64 = vector.extract_strided_slice %61 {offsets = [0, 16], sizes = [17, 8], strides = [1, 1]} : vector<17x32xbf16> to vector<17x8xbf16>
    %65 = vector.extract_strided_slice %61 {offsets = [0, 24], sizes = [17, 8], strides = [1, 1]} : vector<17x32xbf16> to vector<17x8xbf16>
    %66 = vector.shape_cast %62 : vector<17x8xbf16> to vector<1x17x8xbf16>
    %67 = vector.shape_cast %63 : vector<17x8xbf16> to vector<1x17x8xbf16>
    %68 = vector.shape_cast %64 : vector<17x8xbf16> to vector<1x17x8xbf16>
    %69 = vector.shape_cast %65 : vector<17x8xbf16> to vector<1x17x8xbf16>
    %70 = tpu.concatenate %66, %67, %68, %69 in 0 : vector<1x17x8xbf16>, vector<1x17x8xbf16>, vector<1x17x8xbf16>, vector<1x17x8xbf16> -> vector<4x17x8xbf16>
    "tpu.trace_start"() <{level = 10 : i32, message = "hnd,hmd->hnm"}> : () -> ()
    %cst_19 = arith.constant dense<0.000000e+00> : vector<4x17x17xf32>
    %71 = tpu.matmul %48, %59, %cst_19 {dimension_numbers = #tpu.dot_dimension_numbers<[2], [2], [1], [1], [0, 0, 0, 1, 1, 1], [0], [0]>} : vector<4x17x8xbf16>, vector<4x17x8xbf16>, vector<4x17x17xf32> -> vector<4x17x17xf32>
    "tpu.trace_stop"() : () -> ()
    %cst_20 = arith.constant dense<0xFF800000> : vector<4x17xf32>
    %72 = vector.multi_reduction <maximumf>, %71, %cst_20 [2] : vector<4x17x17xf32> to vector<4x17xf32>
    %73 = vector.shape_cast %72 : vector<4x17xf32> to vector<4x17x1xf32>
    %74 = vector.broadcast %73 : vector<4x17x1xf32> to vector<4x17x17xf32>
    %75 = arith.subf %71, %74 : vector<4x17x17xf32>
    %76 = math.exp %75 : vector<4x17x17xf32>
    %cst_21 = arith.constant dense<0.000000e+00> : vector<4x17xf32>
    %77 = vector.multi_reduction <add>, %76, %cst_21 [2] : vector<4x17x17xf32> to vector<4x17xf32>
    %78 = vector.shape_cast %77 : vector<4x17xf32> to vector<4x17x1xf32>
    %79 = tpu.reciprocal %78 {approx = true} : vector<4x17x1xf32> -> vector<4x17x1xf32>
    %80 = vector.broadcast %79 : vector<4x17x1xf32> to vector<4x17x17xf32>
    %81 = arith.mulf %76, %80 : vector<4x17x17xf32>
    %82 = arith.truncf %81 : vector<4x17x17xf32> to vector<4x17x17xbf16>
    "tpu.trace_start"() <{level = 10 : i32, message = "hnm,hmd->hnd"}> : () -> ()
    %cst_22 = arith.constant dense<0.000000e+00> : vector<4x17x8xf32>
    %83 = tpu.matmul %82, %70, %cst_22 {dimension_numbers = #tpu.dot_dimension_numbers<[2], [1], [1], [2], [0, 0, 0, 1, 1, 2], [0], [0]>} : vector<4x17x17xbf16>, vector<4x17x8xbf16>, vector<4x17x8xf32> -> vector<4x17x8xf32>
    "tpu.trace_stop"() : () -> ()
    %84 = vector.extract_strided_slice %83 {offsets = [0, 0, 0], sizes = [1, 17, 8], strides = [1, 1, 1]} : vector<4x17x8xf32> to vector<1x17x8xf32>
    %85 = vector.shape_cast %84 : vector<1x17x8xf32> to vector<17x8xf32>
    %86 = vector.extract_strided_slice %83 {offsets = [1, 0, 0], sizes = [1, 17, 8], strides = [1, 1, 1]} : vector<4x17x8xf32> to vector<1x17x8xf32>
    %87 = vector.shape_cast %86 : vector<1x17x8xf32> to vector<17x8xf32>
    %88 = vector.extract_strided_slice %83 {offsets = [2, 0, 0], sizes = [1, 17, 8], strides = [1, 1, 1]} : vector<4x17x8xf32> to vector<1x17x8xf32>
    %89 = vector.shape_cast %88 : vector<1x17x8xf32> to vector<17x8xf32>
    %90 = vector.extract_strided_slice %83 {offsets = [3, 0, 0], sizes = [1, 17, 8], strides = [1, 1, 1]} : vector<4x17x8xf32> to vector<1x17x8xf32>
    %91 = vector.shape_cast %90 : vector<1x17x8xf32> to vector<17x8xf32>
    %92 = tpu.concatenate %85, %87, %89, %91 in 1 : vector<17x8xf32>, vector<17x8xf32>, vector<17x8xf32>, vector<17x8xf32> -> vector<17x32xf32>
    %93 = arith.truncf %92 : vector<17x32xf32> to vector<17x32xbf16>
    %c0_23 = arith.constant 0 : index
    %c0_24 = arith.constant 0 : index
    %c0_25 = arith.constant 0 : index
    %94 = vector.load %arg10[%c0_23, %c0_24, %c0_25] : memref<1x32x32xbf16, #tpu.memory_space<vmem>>, vector<1x32x32xbf16>
    %95 = vector.shape_cast %94 : vector<1x32x32xbf16> to vector<32x32xbf16>
    %cst_26 = arith.constant dense<0.000000e+00> : vector<17x32xf32>
    %96 = tpu.matmul %93, %95, %cst_26 {dimension_numbers = #tpu.dot_dimension_numbers<[1], [0], [0], [1], [0, 0, 1, 1], [], []>} : vector<17x32xbf16>, vector<32x32xbf16>, vector<17x32xf32> -> vector<17x32xf32>
    %c0_27 = arith.constant 0 : index
    %c0_28 = arith.constant 0 : index
    %c0_29 = arith.constant 0 : index
    %97 = vector.load %arg11[%c0_27, %c0_28, %c0_29] : memref<1x1x32xf32, #tpu.memory_space<vmem>>, vector<1x1x32xf32>
    %98 = vector.shape_cast %97 : vector<1x1x32xf32> to vector<1x32xf32>
    %99 = vector.broadcast %98 : vector<1x32xf32> to vector<17x32xf32>
    %100 = arith.addf %96, %99 : vector<17x32xf32>
    %101 = arith.addf %3, %100 : vector<17x32xf32>
    %c0_30 = arith.constant 0 : index
    %c0_31 = arith.constant 0 : index
    %c0_32 = arith.constant 0 : index
    %102 = vector.load %arg12[%c0_30, %c0_31, %c0_32] : memref<1x1x32xf32, #tpu.memory_space<vmem>>, vector<1x1x32xf32>
    %103 = vector.shape_cast %102 : vector<1x1x32xf32> to vector<1x32xf32>
    %c0_33 = arith.constant 0 : index
    %c0_34 = arith.constant 0 : index
    %c0_35 = arith.constant 0 : index
    %104 = vector.load %arg13[%c0_33, %c0_34, %c0_35] : memref<1x1x32xf32, #tpu.memory_space<vmem>>, vector<1x1x32xf32>
    %105 = vector.shape_cast %104 : vector<1x1x32xf32> to vector<1x32xf32>
    %cst_36 = arith.constant dense<0.000000e+00> : vector<17xf32>
    %106 = vector.multi_reduction <add>, %101, %cst_36 [1] : vector<17x32xf32> to vector<17xf32>
    %107 = vector.shape_cast %106 : vector<17xf32> to vector<17x1xf32>
    %cst_37 = arith.constant 3.200000e+01 : f32
    %108 = vector.broadcast %cst_37 : f32 to vector<17x1xf32>
    %109 = arith.divf %107, %108 : vector<17x1xf32>
    %110 = vector.broadcast %109 : vector<17x1xf32> to vector<17x32xf32>
    %111 = arith.subf %101, %110 : vector<17x32xf32>
    %112 = arith.mulf %111, %111 : vector<17x32xf32>
    %cst_38 = arith.constant dense<0.000000e+00> : vector<17xf32>
    %113 = vector.multi_reduction <add>, %112, %cst_38 [1] : vector<17x32xf32> to vector<17xf32>
    %114 = vector.shape_cast %113 : vector<17xf32> to vector<17x1xf32>
    %cst_39 = arith.constant 3.200000e+01 : f32
    %115 = vector.broadcast %cst_39 : f32 to vector<17x1xf32>
    %116 = arith.divf %114, %115 : vector<17x1xf32>
    %117 = vector.broadcast %109 : vector<17x1xf32> to vector<17x32xf32>
    %118 = arith.subf %101, %117 : vector<17x32xf32>
    %cst_40 = arith.constant 9.99999974E-6 : f32
    %119 = vector.broadcast %cst_40 : f32 to vector<17x1xf32>
    %120 = arith.addf %116, %119 : vector<17x1xf32>
    %121 = math.rsqrt %120 : vector<17x1xf32>
    %122 = vector.broadcast %121 : vector<17x1xf32> to vector<17x32xf32>
    %123 = arith.mulf %118, %122 : vector<17x32xf32>
    %124 = vector.broadcast %103 : vector<1x32xf32> to vector<17x32xf32>
    %125 = arith.mulf %123, %124 : vector<17x32xf32>
    %126 = vector.broadcast %105 : vector<1x32xf32> to vector<17x32xf32>
    %127 = arith.addf %125, %126 : vector<17x32xf32>
    %128 = arith.truncf %127 : vector<17x32xf32> to vector<17x32xbf16>
    %c0_41 = arith.constant 0 : index
    %c0_42 = arith.constant 0 : index
    %c0_43 = arith.constant 0 : index
    %129 = vector.load %arg14[%c0_41, %c0_42, %c0_43] : memref<1x32x128xbf16, #tpu.memory_space<vmem>>, vector<1x32x128xbf16>
    %130 = vector.shape_cast %129 : vector<1x32x128xbf16> to vector<32x128xbf16>
    %cst_44 = arith.constant dense<0.000000e+00> : vector<17x128xf32>
    %131 = tpu.matmul %128, %130, %cst_44 {dimension_numbers = #tpu.dot_dimension_numbers<[1], [0], [0], [1], [0, 0, 1, 1], [], []>} : vector<17x32xbf16>, vector<32x128xbf16>, vector<17x128xf32> -> vector<17x128xf32>
    %c0_45 = arith.constant 0 : index
    %c0_46 = arith.constant 0 : index
    %c0_47 = arith.constant 0 : index
    %132 = vector.load %arg15[%c0_45, %c0_46, %c0_47] : memref<1x1x128xf32, #tpu.memory_space<vmem>>, vector<1x1x128xf32>
    %133 = vector.shape_cast %132 : vector<1x1x128xf32> to vector<1x128xf32>
    %134 = vector.broadcast %133 : vector<1x128xf32> to vector<17x128xf32>
    %135 = arith.addf %131, %134 : vector<17x128xf32>
    %cst_48 = arith.constant 5.000000e-01 : f32
    %136 = vector.broadcast %cst_48 : f32 to vector<17x128xf32>
    %137 = arith.mulf %136, %135 : vector<17x128xf32>
    %cst_49 = arith.constant 4.471500e-02 : f32
    %138 = vector.broadcast %cst_49 : f32 to vector<17x128xf32>
    %139 = arith.mulf %138, %135 : vector<17x128xf32>
    %140 = arith.mulf %139, %135 : vector<17x128xf32>
    %141 = arith.mulf %140, %135 : vector<17x128xf32>
    %142 = arith.addf %135, %141 : vector<17x128xf32>
    %cst_50 = arith.constant 0.797884583 : f32
    %143 = vector.broadcast %cst_50 : f32 to vector<17x128xf32>
    %144 = arith.mulf %143, %142 : vector<17x128xf32>
    %145 = math.tanh %144 : vector<17x128xf32>
    %cst_51 = arith.constant 1.000000e+00 : f32
    %146 = vector.broadcast %cst_51 : f32 to vector<17x128xf32>
    %147 = arith.addf %146, %145 : vector<17x128xf32>
    %148 = arith.mulf %137, %147 : vector<17x128xf32>
    %149 = arith.truncf %148 : vector<17x128xf32> to vector<17x128xbf16>
    %c0_52 = arith.constant 0 : index
    %c0_53 = arith.constant 0 : index
    %c0_54 = arith.constant 0 : index
    %150 = vector.load %arg16[%c0_52, %c0_53, %c0_54] : memref<1x128x32xbf16, #tpu.memory_space<vmem>>, vector<1x128x32xbf16>
    %151 = vector.shape_cast %150 : vector<1x128x32xbf16> to vector<128x32xbf16>
    %cst_55 = arith.constant dense<0.000000e+00> : vector<17x32xf32>
    %152 = tpu.matmul %149, %151, %cst_55 {dimension_numbers = #tpu.dot_dimension_numbers<[1], [0], [0], [1], [0, 0, 1, 1], [], []>} : vector<17x128xbf16>, vector<128x32xbf16>, vector<17x32xf32> -> vector<17x32xf32>
    %c0_56 = arith.constant 0 : index
    %c0_57 = arith.constant 0 : index
    %c0_58 = arith.constant 0 : index
    %153 = vector.load %arg17[%c0_56, %c0_57, %c0_58] : memref<1x1x32xf32, #tpu.memory_space<vmem>>, vector<1x1x32xf32>
    %154 = vector.shape_cast %153 : vector<1x1x32xf32> to vector<1x32xf32>
    %155 = vector.broadcast %154 : vector<1x32xf32> to vector<17x32xf32>
    %156 = arith.addf %152, %155 : vector<17x32xf32>
    %157 = arith.addf %101, %156 : vector<17x32xf32>
    %c0_59 = arith.constant 0 : index
    %c0_60 = arith.constant 0 : index
    %158 = vector.load %arg21[%c0_59, %c0_60] : memref<17x32xf32, #tpu.memory_space<vmem>>, vector<17x32xf32>
    tpu.vector_store %arg21[%c0_59, %c0_60], %157 {strides = array<i32>} : memref<17x32xf32, #tpu.memory_space<vmem>>, vector<17x32xf32>,
    %c1_i32 = arith.constant 1 : i32
    %159 = arith.cmpi eq, %arg1, %c1_i32 : i32
    %160 = arith.extui %159 : i1 to i32
    %c0_i32_61 = arith.constant 0 : i32
    %161 = arith.cmpi ne, %160, %c0_i32_61 : i32
    scf.if %161 {
      %c0_62 = arith.constant 0 : index
      %c0_63 = arith.constant 0 : index
      %162 = vector.load %arg18[%c0_62, %c0_63] : memref<1x32xf32, #tpu.memory_space<vmem>>, vector<1x32xf32>
      %c0_64 = arith.constant 0 : index
      %c0_65 = arith.constant 0 : index
      %163 = vector.load %arg19[%c0_64, %c0_65] : memref<1x32xf32, #tpu.memory_space<vmem>>, vector<1x32xf32>
      %cst_66 = arith.constant dense<0.000000e+00> : vector<17xf32>
      %164 = vector.multi_reduction <add>, %157, %cst_66 [1] : vector<17x32xf32> to vector<17xf32>
      %165 = vector.shape_cast %164 : vector<17xf32> to vector<17x1xf32>
      %cst_67 = arith.constant 3.200000e+01 : f32
      %166 = vector.broadcast %cst_67 : f32 to vector<17x1xf32>
      %167 = arith.divf %165, %166 : vector<17x1xf32>
      %168 = vector.broadcast %167 : vector<17x1xf32> to vector<17x32xf32>
      %169 = arith.subf %157, %168 : vector<17x32xf32>
      %170 = arith.mulf %169, %169 : vector<17x32xf32>
      %cst_68 = arith.constant dense<0.000000e+00> : vector<17xf32>
      %171 = vector.multi_reduction <add>, %170, %cst_68 [1] : vector<17x32xf32> to vector<17xf32>
      %172 = vector.shape_cast %171 : vector<17xf32> to vector<17x1xf32>
      %cst_69 = arith.constant 3.200000e+01 : f32
      %173 = vector.broadcast %cst_69 : f32 to vector<17x1xf32>
      %174 = arith.divf %172, %173 : vector<17x1xf32>
      %175 = vector.broadcast %167 : vector<17x1xf32> to vector<17x32xf32>
      %176 = arith.subf %157, %175 : vector<17x32xf32>
      %cst_70 = arith.constant 9.99999974E-6 : f32
      %177 = vector.broadcast %cst_70 : f32 to vector<17x1xf32>
      %178 = arith.addf %174, %177 : vector<17x1xf32>
      %179 = math.rsqrt %178 : vector<17x1xf32>
      %180 = vector.broadcast %179 : vector<17x1xf32> to vector<17x32xf32>
      %181 = arith.mulf %176, %180 : vector<17x32xf32>
      %182 = vector.broadcast %162 : vector<1x32xf32> to vector<17x32xf32>
      %183 = arith.mulf %181, %182 : vector<17x32xf32>
      %184 = vector.broadcast %163 : vector<1x32xf32> to vector<17x32xf32>
      %185 = arith.addf %183, %184 : vector<17x32xf32>
      %c0_71 = arith.constant 0 : index
      %c0_72 = arith.constant 0 : index
      %c0_73 = arith.constant 0 : index
      %186 = vector.load %arg20[%c0_71, %c0_72, %c0_73] : memref<1x17x32xf32, #tpu.memory_space<vmem>>, vector<1x17x32xf32>
      %187 = vector.shape_cast %186 : vector<1x17x32xf32> to vector<17x32xf32>
      %188 = vector.shape_cast %185 : vector<17x32xf32> to vector<1x17x32xf32>
      tpu.vector_store %arg20[%c0_71, %c0_72, %c0_73], %188 {strides = array<i32>} : memref<1x17x32xf32, #tpu.memory_space<vmem>>, vector<1x17x32xf32>,
    } else {
    }
    return
  }
  func.func @transform_0(%arg0: i32, %arg1: i32) -> (i32, i32, i32) {
    %c0_i32 = arith.constant 0 : i32
    %c0_i32_0 = arith.constant 0 : i32
    %c0_i32_1 = arith.constant 0 : i32
    return %arg0, %c0_i32, %c0_i32_0 : i32, i32, i32
  }
  func.func @transform_1(%arg0: i32, %arg1: i32) -> (i32, i32) {
    %c0_i32 = arith.constant 0 : i32
    %c0_i32_0 = arith.constant 0 : i32
    %c0_i32_1 = arith.constant 0 : i32
    return %c0_i32, %c0_i32_0 : i32, i32
  }
  func.func @transform_2(%arg0: i32, %arg1: i32) -> (i32, i32) {
    %c0_i32 = arith.constant 0 : i32
    %c0_i32_0 = arith.constant 0 : i32
    %c0_i32_1 = arith.constant 0 : i32
    return %c0_i32, %c0_i32_0 : i32, i32
  }
  func.func @transform_3(%arg0: i32, %arg1: i32) -> (i32, i32) {
    %c0_i32 = arith.constant 0 : i32
    %c0_i32_0 = arith.constant 0 : i32
    %c0_i32_1 = arith.constant 0 : i32
    return %c0_i32, %c0_i32_0 : i32, i32
  }
  func.func @transform_4(%arg0: i32, %arg1: i32) -> (i32, i32, i32) {
    %c0_i32 = arith.constant 0 : i32
    %c0_i32_0 = arith.constant 0 : i32
    %c0_i32_1 = arith.constant 0 : i32
    return %arg1, %c0_i32, %c0_i32_0 : i32, i32, i32
  }
  func.func @transform_5(%arg0: i32, %arg1: i32) -> (i32, i32, i32) {
    %c0_i32 = arith.constant 0 : i32
    %c0_i32_0 = arith.constant 0 : i32
    %c0_i32_1 = arith.constant 0 : i32
    return %arg1, %c0_i32, %c0_i32_0 : i32, i32, i32
  }
  func.func @transform_6(%arg0: i32, %arg1: i32) -> (i32, i32, i32) {
    %c0_i32 = arith.constant 0 : i32
    %c0_i32_0 = arith.constant 0 : i32
    %c0_i32_1 = arith.constant 0 : i32
    return %arg1, %c0_i32, %c0_i32_0 : i32, i32, i32
  }
  func.func @transform_7(%arg0: i32, %arg1: i32) -> (i32, i32, i32) {
    %c0_i32 = arith.constant 0 : i32
    %c0_i32_0 = arith.constant 0 : i32
    %c0_i32_1 = arith.constant 0 : i32
    return %arg1, %c0_i32, %c0_i32_0 : i32, i32, i32
  }
  func.func @transform_8(%arg0: i32, %arg1: i32) -> (i32, i32, i32) {
    %c0_i32 = arith.constant 0 : i32
    %c0_i32_0 = arith.constant 0 : i32
    %c0_i32_1 = arith.constant 0 : i32
    return %arg1, %c0_i32, %c0_i32_0 : i32, i32, i32
  }
  func.func @transform_9(%arg0: i32, %arg1: i32) -> (i32, i32, i32) {
    %c0_i32 = arith.constant 0 : i32
    %c0_i32_0 = arith.constant 0 : i32
    %c0_i32_1 = arith.constant 0 : i32
    return %arg1, %c0_i32, %c0_i32_0 : i32, i32, i32
  }
  func.func @transform_10(%arg0: i32, %arg1: i32) -> (i32, i32, i32) {
    %c0_i32 = arith.constant 0 : i32
    %c0_i32_0 = arith.constant 0 : i32
    %c0_i32_1 = arith.constant 0 : i32
    return %arg1, %c0_i32, %c0_i32_0 : i32, i32, i32
  }
  func.func @transform_11(%arg0: i32, %arg1: i32) -> (i32, i32, i32) {
    %c0_i32 = arith.constant 0 : i32
    %c0_i32_0 = arith.constant 0 : i32
    %c0_i32_1 = arith.constant 0 : i32
    return %arg1, %c0_i32, %c0_i32_0 : i32, i32, i32
  }
  func.func @transform_12(%arg0: i32, %arg1: i32) -> (i32, i32, i32) {
    %c0_i32 = arith.constant 0 : i32
    %c0_i32_0 = arith.constant 0 : i32
    %c0_i32_1 = arith.constant 0 : i32
    return %arg1, %c0_i32, %c0_i32_0 : i32, i32, i32
  }
  func.func @transform_13(%arg0: i32, %arg1: i32) -> (i32, i32, i32) {
    %c0_i32 = arith.constant 0 : i32
    %c0_i32_0 = arith.constant 0 : i32
    %c0_i32_1 = arith.constant 0 : i32
    return %arg1, %c0_i32, %c0_i32_0 : i32, i32, i32
  }
  func.func @transform_14(%arg0: i32, %arg1: i32) -> (i32, i32, i32) {
    %c0_i32 = arith.constant 0 : i32
    %c0_i32_0 = arith.constant 0 : i32
    %c0_i32_1 = arith.constant 0 : i32
    return %arg1, %c0_i32, %c0_i32_0 : i32, i32, i32
  }
  func.func @transform_15(%arg0: i32, %arg1: i32) -> (i32, i32, i32) {
    %c0_i32 = arith.constant 0 : i32
    %c0_i32_0 = arith.constant 0 : i32
    %c0_i32_1 = arith.constant 0 : i32
    return %arg1, %c0_i32, %c0_i32_0 : i32, i32, i32
  }
  func.func @transform_16(%arg0: i32, %arg1: i32) -> (i32, i32) {
    %c0_i32 = arith.constant 0 : i32
    %c0_i32_0 = arith.constant 0 : i32
    %c0_i32_1 = arith.constant 0 : i32
    return %c0_i32, %c0_i32_0 : i32, i32
  }
  func.func @transform_17(%arg0: i32, %arg1: i32) -> (i32, i32) {
    %c0_i32 = arith.constant 0 : i32
    %c0_i32_0 = arith.constant 0 : i32
    %c0_i32_1 = arith.constant 0 : i32
    return %c0_i32, %c0_i32_0 : i32, i32
  }
  func.func @transform_18(%arg0: i32, %arg1: i32) -> (i32, i32, i32) {
    %c0_i32 = arith.constant 0 : i32
    %c0_i32_0 = arith.constant 0 : i32
    %c0_i32_1 = arith.constant 0 : i32
    return %arg0, %c0_i32, %c0_i32_0 : i32, i32, i32
  }
}

</mosaic_0001>

<llo_original>
// kernel: tpu_custom_call.1
$region0: #{tpu_custom_call.1}
  #allocation0 [shape = 'u32[]', space=smem, size = 0x4, offset = 0x4, fixed_abs, tag = 'smem constant byte address 0x4 - core index']
  #allocation1 [shape = 'u32[144,128]{1,0:T(1,128)}', space=vmem, size = 0x12000, scoped, tag = 'internal scratch']
  #allocation2 [shape = 'f32[17,32]{1,0:T(8,128)}', space=vmem, size = 0x3000, scoped, tag = 'scratch operand']
  %s0 = inlined_call_operand.hbm [shape: bf16[2,16,64], index: 0, kind: input, shape index: {}]
  %s1 = inlined_call_operand.hbm [shape: bf16[64,32], index: 1, kind: input, shape index: {}]
  %s2 = inlined_call_operand.hbm [shape: f32[1,32], index: 2, kind: input, shape index: {}]
  %s3 = inlined_call_operand.hbm [shape: f32[1,32], index: 3, kind: input, shape index: {}]
  %s4 = inlined_call_operand.hbm [shape: f32[2,1,32], index: 4, kind: input, shape index: {}]
  %s5 = inlined_call_operand.hbm [shape: f32[2,1,32], index: 5, kind: input, shape index: {}]
  %s6 = inlined_call_operand.hbm [shape: bf16[2,32,96], index: 6, kind: input, shape index: {}]
  %s7 = inlined_call_operand.hbm [shape: f32[2,1,96], index: 7, kind: input, shape index: {}]
  %s8 = inlined_call_operand.hbm [shape: bf16[2,32,32], index: 8, kind: input, shape index: {}]
  %s9 = inlined_call_operand.hbm [shape: f32[2,1,32], index: 9, kind: input, shape index: {}]
  %s10 = inlined_call_operand.hbm [shape: f32[2,1,32], index: 10, kind: input, shape index: {}]
  %s11 = inlined_call_operand.hbm [shape: f32[2,1,32], index: 11, kind: input, shape index: {}]
  %s12 = inlined_call_operand.hbm [shape: bf16[2,32,128], index: 12, kind: input, shape index: {}]
  %s13 = inlined_call_operand.hbm [shape: f32[2,1,128], index: 13, kind: input, shape index: {}]
  %s14 = inlined_call_operand.hbm [shape: bf16[2,128,32], index: 14, kind: input, shape index: {}]
  %s15 = inlined_call_operand.hbm [shape: f32[2,1,32], index: 15, kind: input, shape index: {}]
  %s16 = inlined_call_operand.hbm [shape: f32[1,32], index: 16, kind: input, shape index: {}]
  %s17 = inlined_call_operand.hbm [shape: f32[1,32], index: 17, kind: input, shape index: {}]
  %s18 = inlined_call_operand.hbm [shape: f32[2,17,32], index: 18, kind: output, shape index: {}]
  %s19 = sld [smem:[#allocation0]]
  $region185: #{tpu_custom_call.1} parent=0
    _
  %s21 = ssub.s32 1, %s19
  %s22 = scalar_select 0, %s21, %s19
  $region1: #{tpu_custom_call.1} parent=0
    #allocation3 [shape = 'u8[8192]{0}', space=vmem, size = 0x2000, scoped, tag = 'input window, operand 0']
    #allocation4 [shape = 's32[2]{0}', space=sflag, size = 0x8, scoped, tag = 'scoped memory for tpu_custom_call.1']
    #allocation5 [shape = 's32[2]{0}', space=sflag, size = 0x8, scoped, tag = 'scoped memory for tpu_custom_call.1']
    #allocation6 [shape = 'u8[16384]{0}', space=vmem, size = 0x4000, scoped, tag = 'input window, operand 1, single buffered']
    #allocation7 [shape = 's32[1]{0}', space=sflag, size = 0x4, scoped, tag = 'scoped memory for tpu_custom_call.1']
    #allocation8 [shape = 'u8[512]{0}', space=vmem, size = 0x400, scoped, tag = 'input window, operand 2, single buffered']
    #allocation9 [shape = 'u8[512]{0}', space=vmem, size = 0x400, scoped, tag = 'input window, operand 3, single buffered']
    #allocation10 [shape = 's32[1]{0}', space=sflag, size = 0x4, scoped, tag = 'scoped memory for tpu_custom_call.1']
    #allocation11 [shape = 'u8[1024]{0}', space=vmem, size = 0x400, scoped, tag = 'input window, operand 4']
    #allocation12 [shape = 'u8[1024]{0}', space=vmem, size = 0x400, scoped, tag = 'input window, operand 5']
    #allocation13 [shape = 'u8[16384]{0}', space=vmem, size = 0x4000, scoped, tag = 'input window, operand 6']
    #allocation14 [shape = 'u8[1024]{0}', space=vmem, size = 0x400, scoped, tag = 'input window, operand 7']
    #allocation15 [shape = 'u8[16384]{0}', space=vmem, size = 0x4000, scoped, tag = 'input window, operand 8']
    #allocation16 [shape = 'u8[1024]{0}', space=vmem, size = 0x400, scoped, tag = 'input window, operand 9']
    #allocation17 [shape = 'u8[1024]{0}', space=vmem, size = 0x400, scoped, tag = 'input window, operand 10']
    #allocation18 [shape = 'u8[1024]{0}', space=vmem, size = 0x400, scoped, tag = 'input window, operand 11']
    #allocation19 [shape = 'u8[16384]{0}', space=vmem, size = 0x4000, scoped, tag = 'input window, operand 12']
    #allocation20 [shape = 'u8[1024]{0}', space=vmem, size = 0x400, scoped, tag = 'input window, operand 13']
    #allocation21 [shape = 'u8[65536]{0}', space=vmem, size = 0x10000, scoped, tag = 'input window, operand 14']
    #allocation22 [shape = 'u8[1024]{0}', space=vmem, size = 0x400, scoped, tag = 'input window, operand 15']
    #allocation23 [shape = 'u8[512]{0}', space=vmem, size = 0x400, scoped, tag = 'input window, operand 16, single buffered']
    #allocation24 [shape = 'u8[512]{0}', space=vmem, size = 0x400, scoped, tag = 'input window, operand 17, single buffered']
    #allocation25 [shape = 'u8[24576]{0}', space=vmem, size = 0x6000, scoped, tag = 'output window, operand 0']
    %23 = vsyncpa [#allocation4], 0
    %s24 = scalar_lea.sflag [#allocation4], 1
    %25 = vsyncpa %s24, 0
    %26 = vsyncpa [#allocation7], 0
    %27 = vsyncpa [#allocation10], 0
    %28 = vsyncpa [#allocation5], 0
    %s29 = scalar_lea.sflag [#allocation5], 1
    %30 = vsyncpa %s29, 0
    loop: start=0, step=1, limit=6
    $region2: #{tpu_custom_call.1} parent=1 // loop_pre_header
      _
    $region3: #{tpu_custom_call.1} parent=1 // loop_header
      %s32 = sphi 0, %s36
      %p33 = scmp.ge.s32.totalorder %s32, 6
      %s39 = sphi 0, %s51
      %s40 = sphi 0, %s47
      %s41 = sphi 0, %s39
      %s42 = sphi 0, %s40
      %s43 = sphi 0, %s41
      %s44 = sphi 0, %s42
      %s54 = sphi 0, %s56
      %s57 = sphi 0, %s54
      %s58 = sphi 0, %s57
      %s74 = sphi 0, %s58
      %s78 = sphi 0, %s78
      %s80 = sphi 0, %s78
      %s81 = sphi 0, %s80
      %s95 = sphi 0, %s81
      %s99 = sphi 0, %s99
      %s101 = sphi 0, %s99
      %s102 = sphi 0, %s101
      %s116 = sphi 0, %s102
      %s120 = sphi 0, %s120
      %s122 = sphi 0, %s120
      %s123 = sphi 0, %s122
      %s137 = sphi 0, %s123
      %s143 = sphi 0, %s145
      %s146 = sphi 0, %s143
      %s147 = sphi 0, %s146
      %s163 = sphi 0, %s147
      %s169 = sphi 0, %s171
      %s172 = sphi 0, %s169
      %s173 = sphi 0, %s172
      %s189 = sphi 0, %s173
      %s195 = sphi 0, %s197
      %s198 = sphi 0, %s195
      %s199 = sphi 0, %s198
      %s215 = sphi 0, %s199
      %s221 = sphi 0, %s223
      %s224 = sphi 0, %s221
      %s225 = sphi 0, %s224
      %s241 = sphi 0, %s225
      %s247 = sphi 0, %s249
      %s250 = sphi 0, %s247
      %s251 = sphi 0, %s250
      %s267 = sphi 0, %s251
      %s273 = sphi 0, %s275
      %s276 = sphi 0, %s273
      %s277 = sphi 0, %s276
      %s293 = sphi 0, %s277
      %s299 = sphi 0, %s301
      %s302 = sphi 0, %s299
      %s303 = sphi 0, %s302
      %s319 = sphi 0, %s303
      %s325 = sphi 0, %s327
      %s328 = sphi 0, %s325
      %s329 = sphi 0, %s328
      %s345 = sphi 0, %s329
      %s351 = sphi 0, %s353
      %s354 = sphi 0, %s351
      %s355 = sphi 0, %s354
      %s371 = sphi 0, %s355
      %s377 = sphi 0, %s379
      %s380 = sphi 0, %s377
      %s381 = sphi 0, %s380
      %s397 = sphi 0, %s381
      %s403 = sphi 0, %s405
      %s406 = sphi 0, %s403
      %s407 = sphi 0, %s406
      %s423 = sphi 0, %s407
      %s429 = sphi 0, %s431
      %s432 = sphi 0, %s429
      %s433 = sphi 0, %s432
      %s449 = sphi 0, %s433
      %s453 = sphi 0, %s453
      %s455 = sphi 0, %s453
      %s456 = sphi 0, %s455
      %s470 = sphi 0, %s456
      %s474 = sphi 0, %s474
      %s476 = sphi 0, %s474
      %s477 = sphi 0, %s476
      %s491 = sphi 0, %s477
      %s497 = sphi 0, %s499
      %s500 = sphi 0, %s497
      %s501 = sphi 0, %s500
      %s517 = sphi 0, %s501
    $region4: #{tpu_custom_call.1} parent=1 // loop_header_branch
      %35 = sbr.rel (%p33) target = $region8
    $region5: #{tpu_custom_call.1} parent=1 // loop_body
      %s37 = ssub.s32 %s32, 1
      %s38 = ssub.s32 %s32, 2
      %s45 = sadd.s32 1, %s40
      %p46 = scmp.ge.s32.totalorder %s45, 2
      %s47 = scalar_select %p46, 0, %s45
      %s48 = sadd.s32 1, %s39
      %s49 = scalar_select %p46, %s48, %s39
      %p50 = scmp.ge.s32.totalorder %s49, 2
      %s51 = scalar_select %p50, 0, %s49
      %s52 = ssub.s32 %s39, %s51
      %p53 = scmp.eq.s32.totalorder %s52, 0
      %s55 = sadd.s32 %s54, 1
      %s56 = scalar_select %p53, %s54, %s55
      %p59 = pneg %p53
      %p60 = scmp.eq.s32.totalorder %s32, 3
      %p61 = por %p59, %p60
      %p62 = scmp.ne.s32.totalorder %s54, %s57
      %p63 = scmp.eq.s32.totalorder %s32, 0
      %p64 = por %p62, %p63
      %p65 = scmp.ne.s32.totalorder %s54, %s57
      %p66 = scmp.eq.s32.totalorder %s37, 3
      %p67 = por %p65, %p66
      %p68 = scmp.ne.s32.totalorder %s57, %s58
      %p69 = scmp.eq.s32.totalorder %s37, 0
      %p70 = por %p68, %p69
      %p71 = scmp.ne.s32.totalorder %s57, %s58
      %p72 = scmp.eq.s32.totalorder %s38, 3
      %p73 = por %p71, %p72
      %p75 = scmp.ne.s32.totalorder %s58, %s74
      %p76 = scmp.eq.s32.totalorder %s38, 0
      %p77 = por %p75, %p76
      %s79 = sadd.s32 %s78, 1
      %p82 = scmp.eq.s32.totalorder %s32, 3
      %p83 = scmp.ne.s32.totalorder %s78, %s80
      %p84 = scmp.eq.s32.totalorder %s32, 0
      %p85 = por %p83, %p84
      %p86 = scmp.ne.s32.totalorder %s78, %s80
      %p87 = scmp.eq.s32.totalorder %s37, 3
      %p88 = por %p86, %p87
      %p89 = scmp.ne.s32.totalorder %s80, %s81
      %p90 = scmp.eq.s32.totalorder %s37, 0
      %p91 = por %p89, %p90
      %p92 = scmp.ne.s32.totalorder %s80, %s81
      %p93 = scmp.eq.s32.totalorder %s38, 3
      %p94 = por %p92, %p93
      %p96 = scmp.ne.s32.totalorder %s81, %s95
      %p97 = scmp.eq.s32.totalorder %s38, 0
      %p98 = por %p96, %p97
      %s100 = sadd.s32 %s99, 1
      %p103 = scmp.eq.s32.totalorder %s32, 3
      %p104 = scmp.ne.s32.totalorder %s99, %s101
      %p105 = scmp.eq.s32.totalorder %s32, 0
      %p106 = por %p104, %p105
      %p107 = scmp.ne.s32.totalorder %s99, %s101
      %p108 = scmp.eq.s32.totalorder %s37, 3
      %p109 = por %p107, %p108
      %p110 = scmp.ne.s32.totalorder %s101, %s102
      %p111 = scmp.eq.s32.totalorder %s37, 0
      %p112 = por %p110, %p111
      %p113 = scmp.ne.s32.totalorder %s101, %s102
      %p114 = scmp.eq.s32.totalorder %s38, 3
      %p115 = por %p113, %p114
      %p117 = scmp.ne.s32.totalorder %s102, %s116
      %p118 = scmp.eq.s32.totalorder %s38, 0
      %p119 = por %p117, %p118
      %s121 = sadd.s32 %s120, 1
      %p124 = scmp.eq.s32.totalorder %s32, 3
      %p125 = scmp.ne.s32.totalorder %s120, %s122
      %p126 = scmp.eq.s32.totalorder %s32, 0
      %p127 = por %p125, %p126
      %p128 = scmp.ne.s32.totalorder %s120, %s122
      %p129 = scmp.eq.s32.totalorder %s37, 3
      %p130 = por %p128, %p129
      %p131 = scmp.ne.s32.totalorder %s122, %s123
      %p132 = scmp.eq.s32.totalorder %s37, 0
      %p133 = por %p131, %p132
      %p134 = scmp.ne.s32.totalorder %s122, %s123
      %p135 = scmp.eq.s32.totalorder %s38, 3
      %p136 = por %p134, %p135
      %p138 = scmp.ne.s32.totalorder %s123, %s137
      %p139 = scmp.eq.s32.totalorder %s38, 0
      %p140 = por %p138, %p139
      %s141 = ssub.s32 %s40, %s47
      %p142 = scmp.eq.s32.totalorder %s141, 0
      %s144 = sadd.s32 %s143, 1
      %s145 = scalar_select %p142, %s143, %s144
      %p148 = pneg %p142
      %p149 = scmp.eq.s32.totalorder %s32, 3
      %p150 = por %p148, %p149
      %p151 = scmp.ne.s32.totalorder %s143, %s146
      %p152 = scmp.eq.s32.totalorder %s32, 0
      %p153 = por %p151, %p152
      %p154 = scmp.ne.s32.totalorder %s143, %s146
      %p155 = scmp.eq.s32.totalorder %s37, 3
      %p156 = por %p154, %p155
      %p157 = scmp.ne.s32.totalorder %s146, %s147
      %p158 = scmp.eq.s32.totalorder %s37, 0
      %p159 = por %p157, %p158
      %p160 = scmp.ne.s32.totalorder %s146, %s147
      %p161 = scmp.eq.s32.totalorder %s38, 3
      %p162 = por %p160, %p161
      %p164 = scmp.ne.s32.totalorder %s147, %s163
      %p165 = scmp.eq.s32.totalorder %s38, 0
      %p166 = por %p164, %p165
      %s167 = ssub.s32 %s40, %s47
      %p168 = scmp.eq.s32.totalorder %s167, 0
      %s170 = sadd.s32 %s169, 1
      %s171 = scalar_select %p168, %s169, %s170
      %p174 = pneg %p168
      %p175 = scmp.eq.s32.totalorder %s32, 3
      %p176 = por %p174, %p175
      %p177 = scmp.ne.s32.totalorder %s169, %s172
      %p178 = scmp.eq.s32.totalorder %s32, 0
      %p179 = por %p177, %p178
      %p180 = scmp.ne.s32.totalorder %s169, %s172
      %p181 = scmp.eq.s32.totalorder %s37, 3
      %p182 = por %p180, %p181
      %p183 = scmp.ne.s32.totalorder %s172, %s173
      %p184 = scmp.eq.s32.totalorder %s37, 0
      %p185 = por %p183, %p184
      %p186 = scmp.ne.s32.totalorder %s172, %s173
      %p187 = scmp.eq.s32.totalorder %s38, 3
      %p188 = por %p186, %p187
      %p190 = scmp.ne.s32.totalorder %s173, %s189
      %p191 = scmp.eq.s32.totalorder %s38, 0
      %p192 = por %p190, %p191
      %s193 = ssub.s32 %s40, %s47
      %p194 = scmp.eq.s32.totalorder %s193, 0
      %s196 = sadd.s32 %s195, 1
      %s197 = scalar_select %p194, %s195, %s196
      %p200 = pneg %p194
      %p201 = scmp.eq.s32.totalorder %s32, 3
      %p202 = por %p200, %p201
      %p203 = scmp.ne.s32.totalorder %s195, %s198
      %p204 = scmp.eq.s32.totalorder %s32, 0
      %p205 = por %p203, %p204
      %p206 = scmp.ne.s32.totalorder %s195, %s198
      %p207 = scmp.eq.s32.totalorder %s37, 3
      %p208 = por %p206, %p207
      %p209 = scmp.ne.s32.totalorder %s198, %s199
      %p210 = scmp.eq.s32.totalorder %s37, 0
      %p211 = por %p209, %p210
      %p212 = scmp.ne.s32.totalorder %s198, %s199
      %p213 = scmp.eq.s32.totalorder %s38, 3
      %p214 = por %p212, %p213
      %p216 = scmp.ne.s32.totalorder %s199, %s215
      %p217 = scmp.eq.s32.totalorder %s38, 0
      %p218 = por %p216, %p217
      %s219 = ssub.s32 %s40, %s47
      %p220 = scmp.eq.s32.totalorder %s219, 0
      %s222 = sadd.s32 %s221, 1
      %s223 = scalar_select %p220, %s221, %s222
      %p226 = pneg %p220
      %p227 = scmp.eq.s32.totalorder %s32, 3
      %p228 = por %p226, %p227
      %p229 = scmp.ne.s32.totalorder %s221, %s224
      %p230 = scmp.eq.s32.totalorder %s32, 0
      %p231 = por %p229, %p230
      %p232 = scmp.ne.s32.totalorder %s221, %s224
      %p233 = scmp.eq.s32.totalorder %s37, 3
      %p234 = por %p232, %p233
      %p235 = scmp.ne.s32.totalorder %s224, %s225
      %p236 = scmp.eq.s32.totalorder %s37, 0
      %p237 = por %p235, %p236
      %p238 = scmp.ne.s32.totalorder %s224, %s225
      %p239 = scmp.eq.s32.totalorder %s38, 3
      %p240 = por %p238, %p239
      %p242 = scmp.ne.s32.totalorder %s225, %s241
      %p243 = scmp.eq.s32.totalorder %s38, 0
      %p244 = por %p242, %p243
      %s245 = ssub.s32 %s40, %s47
      %p246 = scmp.eq.s32.totalorder %s245, 0
      %s248 = sadd.s32 %s247, 1
      %s249 = scalar_select %p246, %s247, %s248
      %p252 = pneg %p246
      %p253 = scmp.eq.s32.totalorder %s32, 3
      %p254 = por %p252, %p253
      %p255 = scmp.ne.s32.totalorder %s247, %s250
      %p256 = scmp.eq.s32.totalorder %s32, 0
      %p257 = por %p255, %p256
      %p258 = scmp.ne.s32.totalorder %s247, %s250
      %p259 = scmp.eq.s32.totalorder %s37, 3
      %p260 = por %p258, %p259
      %p261 = scmp.ne.s32.totalorder %s250, %s251
      %p262 = scmp.eq.s32.totalorder %s37, 0
      %p263 = por %p261, %p262
      %p264 = scmp.ne.s32.totalorder %s250, %s251
      %p265 = scmp.eq.s32.totalorder %s38, 3
      %p266 = por %p264, %p265
      %p268 = scmp.ne.s32.totalorder %s251, %s267
      %p269 = scmp.eq.s32.totalorder %s38, 0
      %p270 = por %p268, %p269
      %s271 = ssub.s32 %s40, %s47
      %p272 = scmp.eq.s32.totalorder %s271, 0
      %s274 = sadd.s32 %s273, 1
      %s275 = scalar_select %p272, %s273, %s274
      %p278 = pneg %p272
      %p279 = scmp.eq.s32.totalorder %s32, 3
      %p280 = por %p278, %p279
      %p281 = scmp.ne.s32.totalorder %s273, %s276
      %p282 = scmp.eq.s32.totalorder %s32, 0
      %p283 = por %p281, %p282
      %p284 = scmp.ne.s32.totalorder %s273, %s276
      %p285 = scmp.eq.s32.totalorder %s37, 3
      %p286 = por %p284, %p285
      %p287 = scmp.ne.s32.totalorder %s276, %s277
      %p288 = scmp.eq.s32.totalorder %s37, 0
      %p289 = por %p287, %p288
      %p290 = scmp.ne.s32.totalorder %s276, %s277
      %p291 = scmp.eq.s32.totalorder %s38, 3
      %p292 = por %p290, %p291
      %p294 = scmp.ne.s32.totalorder %s277, %s293
      %p295 = scmp.eq.s32.totalorder %s38, 0
      %p296 = por %p294, %p295
      %s297 = ssub.s32 %s40, %s47
      %p298 = scmp.eq.s32.totalorder %s297, 0
      %s300 = sadd.s32 %s299, 1
      %s301 = scalar_select %p298, %s299, %s300
      %p304 = pneg %p298
      %p305 = scmp.eq.s32.totalorder %s32, 3
      %p306 = por %p304, %p305
      %p307 = scmp.ne.s32.totalorder %s299, %s302
      %p308 = scmp.eq.s32.totalorder %s32, 0
      %p309 = por %p307, %p308
      %p310 = scmp.ne.s32.totalorder %s299, %s302
      %p311 = scmp.eq.s32.totalorder %s37, 3
      %p312 = por %p310, %p311
      %p313 = scmp.ne.s32.totalorder %s302, %s303
      %p314 = scmp.eq.s32.totalorder %s37, 0
      %p315 = por %p313, %p314
      %p316 = scmp.ne.s32.totalorder %s302, %s303
      %p317 = scmp.eq.s32.totalorder %s38, 3
      %p318 = por %p316, %p317
      %p320 = scmp.ne.s32.totalorder %s303, %s319
      %p321 = scmp.eq.s32.totalorder %s38, 0
      %p322 = por %p320, %p321
      %s323 = ssub.s32 %s40, %s47
      %p324 = scmp.eq.s32.totalorder %s323, 0
      %s326 = sadd.s32 %s325, 1
      %s327 = scalar_select %p324, %s325, %s326
      %p330 = pneg %p324
      %p331 = scmp.eq.s32.totalorder %s32, 3
      %p332 = por %p330, %p331
      %p333 = scmp.ne.s32.totalorder %s325, %s328
      %p334 = scmp.eq.s32.totalorder %s32, 0
      %p335 = por %p333, %p334
      %p336 = scmp.ne.s32.totalorder %s325, %s328
      %p337 = scmp.eq.s32.totalorder %s37, 3
      %p338 = por %p336, %p337
      %p339 = scmp.ne.s32.totalorder %s328, %s329
      %p340 = scmp.eq.s32.totalorder %s37, 0
      %p341 = por %p339, %p340
      %p342 = scmp.ne.s32.totalorder %s328, %s329
      %p343 = scmp.eq.s32.totalorder %s38, 3
      %p344 = por %p342, %p343
      %p346 = scmp.ne.s32.totalorder %s329, %s345
      %p347 = scmp.eq.s32.totalorder %s38, 0
      %p348 = por %p346, %p347
      %s349 = ssub.s32 %s40, %s47
      %p350 = scmp.eq.s32.totalorder %s349, 0
      %s352 = sadd.s32 %s351, 1
      %s353 = scalar_select %p350, %s351, %s352
      %p356 = pneg %p350
      %p357 = scmp.eq.s32.totalorder %s32, 3
      %p358 = por %p356, %p357
      %p359 = scmp.ne.s32.totalorder %s351, %s354
      %p360 = scmp.eq.s32.totalorder %s32, 0
      %p361 = por %p359, %p360
      %p362 = scmp.ne.s32.totalorder %s351, %s354
      %p363 = scmp.eq.s32.totalorder %s37, 3
      %p364 = por %p362, %p363
      %p365 = scmp.ne.s32.totalorder %s354, %s355
      %p366 = scmp.eq.s32.totalorder %s37, 0
      %p367 = por %p365, %p366
      %p368 = scmp.ne.s32.totalorder %s354, %s355
      %p369 = scmp.eq.s32.totalorder %s38, 3
      %p370 = por %p368, %p369
      %p372 = scmp.ne.s32.totalorder %s355, %s371
      %p373 = scmp.eq.s32.totalorder %s38, 0
      %p374 = por %p372, %p373
      %s375 = ssub.s32 %s40, %s47
      %p376 = scmp.eq.s32.totalorder %s375, 0
      %s378 = sadd.s32 %s377, 1
      %s379 = scalar_select %p376, %s377, %s378
      %p382 = pneg %p376
      %p383 = scmp.eq.s32.totalorder %s32, 3
      %p384 = por %p382, %p383
      %p385 = scmp.ne.s32.totalorder %s377, %s380
      %p386 = scmp.eq.s32.totalorder %s32, 0
      %p387 = por %p385, %p386
      %p388 = scmp.ne.s32.totalorder %s377, %s380
      %p389 = scmp.eq.s32.totalorder %s37, 3
      %p390 = por %p388, %p389
      %p391 = scmp.ne.s32.totalorder %s380, %s381
      %p392 = scmp.eq.s32.totalorder %s37, 0
      %p393 = por %p391, %p392
      %p394 = scmp.ne.s32.totalorder %s380, %s381
      %p395 = scmp.eq.s32.totalorder %s38, 3
      %p396 = por %p394, %p395
      %p398 = scmp.ne.s32.totalorder %s381, %s397
      %p399 = scmp.eq.s32.totalorder %s38, 0
      %p400 = por %p398, %p399
      %s401 = ssub.s32 %s40, %s47
      %p402 = scmp.eq.s32.totalorder %s401, 0
      %s404 = sadd.s32 %s403, 1
      %s405 = scalar_select %p402, %s403, %s404
      %p408 = pneg %p402
      %p409 = scmp.eq.s32.totalorder %s32, 3
      %p410 = por %p408, %p409
      %p411 = scmp.ne.s32.totalorder %s403, %s406
      %p412 = scmp.eq.s32.totalorder %s32, 0
      %p413 = por %p411, %p412
      %p414 = scmp.ne.s32.totalorder %s403, %s406
      %p415 = scmp.eq.s32.totalorder %s37, 3
      %p416 = por %p414, %p415
      %p417 = scmp.ne.s32.totalorder %s406, %s407
      %p418 = scmp.eq.s32.totalorder %s37, 0
      %p419 = por %p417, %p418
      %p420 = scmp.ne.s32.totalorder %s406, %s407
      %p421 = scmp.eq.s32.totalorder %s38, 3
      %p422 = por %p420, %p421
      %p424 = scmp.ne.s32.totalorder %s407, %s423
      %p425 = scmp.eq.s32.totalorder %s38, 0
      %p426 = por %p424, %p425
      %s427 = ssub.s32 %s40, %s47
      %p428 = scmp.eq.s32.totalorder %s427, 0
      %s430 = sadd.s32 %s429, 1
      %s431 = scalar_select %p428, %s429, %s430
      %p434 = pneg %p428
      %p435 = scmp.eq.s32.totalorder %s32, 3
      %p436 = por %p434, %p435
      %p437 = scmp.ne.s32.totalorder %s429, %s432
      %p438 = scmp.eq.s32.totalorder %s32, 0
      %p439 = por %p437, %p438
      %p440 = scmp.ne.s32.totalorder %s429, %s432
      %p441 = scmp.eq.s32.totalorder %s37, 3
      %p442 = por %p440, %p441
      %p443 = scmp.ne.s32.totalorder %s432, %s433
      %p444 = scmp.eq.s32.totalorder %s37, 0
      %p445 = por %p443, %p444
      %p446 = scmp.ne.s32.totalorder %s432, %s433
      %p447 = scmp.eq.s32.totalorder %s38, 3
      %p448 = por %p446, %p447
      %p450 = scmp.ne.s32.totalorder %s433, %s449
      %p451 = scmp.eq.s32.totalorder %s38, 0
      %p452 = por %p450, %p451
      %s454 = sadd.s32 %s453, 1
      %p457 = scmp.eq.s32.totalorder %s32, 3
      %p458 = scmp.ne.s32.totalorder %s453, %s455
      %p459 = scmp.eq.s32.totalorder %s32, 0
      %p460 = por %p458, %p459
      %p461 = scmp.ne.s32.totalorder %s453, %s455
      %p462 = scmp.eq.s32.totalorder %s37, 3
      %p463 = por %p461, %p462
      %p464 = scmp.ne.s32.totalorder %s455, %s456
      %p465 = scmp.eq.s32.totalorder %s37, 0
      %p466 = por %p464, %p465
      %p467 = scmp.ne.s32.totalorder %s455, %s456
      %p468 = scmp.eq.s32.totalorder %s38, 3
      %p469 = por %p467, %p468
      %p471 = scmp.ne.s32.totalorder %s456, %s470
      %p472 = scmp.eq.s32.totalorder %s38, 0
      %p473 = por %p471, %p472
      %s475 = sadd.s32 %s474, 1
      %p478 = scmp.eq.s32.totalorder %s32, 3
      %p479 = scmp.ne.s32.totalorder %s474, %s476
      %p480 = scmp.eq.s32.totalorder %s32, 0
      %p481 = por %p479, %p480
      %p482 = scmp.ne.s32.totalorder %s474, %s476
      %p483 = scmp.eq.s32.totalorder %s37, 3
      %p484 = por %p482, %p483
      %p485 = scmp.ne.s32.totalorder %s476, %s477
      %p486 = scmp.eq.s32.totalorder %s37, 0
      %p487 = por %p485, %p486
      %p488 = scmp.ne.s32.totalorder %s476, %s477
      %p489 = scmp.eq.s32.totalorder %s38, 3
      %p490 = por %p488, %p489
      %p492 = scmp.ne.s32.totalorder %s477, %s491
      %p493 = scmp.eq.s32.totalorder %s38, 0
      %p494 = por %p492, %p493
      %s495 = ssub.s32 %s39, %s51
      %p496 = scmp.eq.s32.totalorder %s495, 0
      %s498 = sadd.s32 %s497, 1
      %s499 = scalar_select %p496, %s497, %s498
      %p502 = pneg %p496
      %p503 = scmp.eq.s32.totalorder %s32, 3
      %p504 = por %p502, %p503
      %p505 = scmp.ne.s32.totalorder %s497, %s500
      %p506 = scmp.eq.s32.totalorder %s32, 0
      %p507 = por %p505, %p506
      %p508 = scmp.ne.s32.totalorder %s497, %s500
      %p509 = scmp.eq.s32.totalorder %s37, 3
      %p510 = por %p508, %p509
      %p511 = scmp.ne.s32.totalorder %s500, %s501
      %p512 = scmp.eq.s32.totalorder %s37, 0
      %p513 = por %p511, %p512
      %p514 = scmp.ne.s32.totalorder %s500, %s501
      %p515 = scmp.eq.s32.totalorder %s38, 3
      %p516 = por %p514, %p515
      %p518 = scmp.ne.s32.totalorder %s501, %s517
      %p519 = scmp.eq.s32.totalorder %s38, 0
      %p520 = por %p518, %p519
      %p521 = scmp.le.s32.totalorder 1, %s32
      %p522 = scmp.lt.s32.totalorder %s32, 5
      %p523 = pnand %p521, %p522
      %p524 = pneg %p523
      // Predicated region
      $region9: #{tpu_custom_call.1} parent=5 // pred_check
        _
      $region10: #{tpu_custom_call.1} parent=5 // pred_check_branch
        %526 = sbr.rel (%p523) target = $region12
      $region11: #{tpu_custom_call.1} parent=5 // pred_region
        %s527 = ssub.s32 %s32, 1
        // Predicated region
        $region13: #{tpu_custom_call.1} parent=11 // pred_check
          %p528 = pneg %p91
        $region14: #{tpu_custom_call.1} parent=11 // pred_check_branch
          %530 = sbr.rel (%p528) target = $region16
        $region15: #{tpu_custom_call.1} parent=11 // pred_region
          %s532 = ssub.s32 512, 512
          %533 = vsyncadd [#allocation7], %s532
          %s534 = sshll.u32 [#allocation6], 4
          %s535 = int_to_ptr.vmem [resolvable:$true] %s534
          %540 = dma.hbm_to_vmem [thread:$0]  %s1, 512, %s535, [#allocation7], 64, 64, 4
        $region16: #{tpu_custom_call.1} parent=11 // pred_fallthru
          _
        // Predicated region
        $region17: #{tpu_custom_call.1} parent=11 // pred_check
          %p541 = pneg %p112
        $region18: #{tpu_custom_call.1} parent=11 // pred_check_branch
          %543 = sbr.rel (%p541) target = $region20
        $region19: #{tpu_custom_call.1} parent=11 // pred_region
          %s545 = ssub.s32 16, 16
          %546 = vsyncadd [#allocation7], %s545
          %s548 = sshll.u32 [#allocation8], 4
          %s549 = int_to_ptr.vmem [resolvable:$true] %s548
          %551 = dma.hbm_to_vmem [thread:$0]  %s2, 16, %s549, [#allocation7]
        $region20: #{tpu_custom_call.1} parent=11 // pred_fallthru
          _
        // Predicated region
        $region21: #{tpu_custom_call.1} parent=11 // pred_check
          %p552 = pneg %p133
        $region22: #{tpu_custom_call.1} parent=11 // pred_check_branch
          %554 = sbr.rel (%p552) target = $region24
        $region23: #{tpu_custom_call.1} parent=11 // pred_region
          %s556 = ssub.s32 16, 16
          %557 = vsyncadd [#allocation10], %s556
          %s559 = sshll.u32 [#allocation9], 4
          %s560 = int_to_ptr.vmem [resolvable:$true] %s559
          %562 = dma.hbm_to_vmem [thread:$0]  %s3, 16, %s560, [#allocation10]
        $region24: #{tpu_custom_call.1} parent=11 // pred_fallthru
          _
        // Predicated region
        $region25: #{tpu_custom_call.1} parent=11 // pred_check
          %p563 = pneg %p466
        $region26: #{tpu_custom_call.1} parent=11 // pred_check_branch
          %565 = sbr.rel (%p563) target = $region28
        $region27: #{tpu_custom_call.1} parent=11 // pred_region
          %s567 = ssub.s32 16, 16
          %568 = vsyncadd [#allocation7], %s567
          %s570 = sshll.u32 [#allocation23], 4
          %s571 = int_to_ptr.vmem [resolvable:$true] %s570
          %573 = dma.hbm_to_vmem [thread:$0]  %s16, 16, %s571, [#allocation7]
        $region28: #{tpu_custom_call.1} parent=11 // pred_fallthru
          _
        // Predicated region
        $region29: #{tpu_custom_call.1} parent=11 // pred_check
          %p574 = pneg %p487
        $region30: #{tpu_custom_call.1} parent=11 // pred_check_branch
          %576 = sbr.rel (%p574) target = $region32
        $region31: #{tpu_custom_call.1} parent=11 // pred_region
          %s578 = ssub.s32 16, 16
          %579 = vsyncadd [#allocation10], %s578
          %s581 = sshll.u32 [#allocation24], 4
          %s582 = int_to_ptr.vmem [resolvable:$true] %s581
          %584 = dma.hbm_to_vmem [thread:$0]  %s17, 16, %s582, [#allocation10]
        $region32: #{tpu_custom_call.1} parent=11 // pred_fallthru
          _
      $region12: #{tpu_custom_call.1} parent=5 // pred_fallthru
        _
      %p585 = scmp.lt.s32.totalorder %s32, 4
      // Predicated region
      $region33: #{tpu_custom_call.1} parent=5 // pred_check
        %p586 = pneg %p585
      $region34: #{tpu_custom_call.1} parent=5 // pred_check_branch
        %588 = sbr.rel (%p586) target = $region36
      $region35: #{tpu_custom_call.1} parent=5 // pred_region
        // Predicated region
        $region37: #{tpu_custom_call.1} parent=35 // pred_check
          %p589 = pneg %p64
        $region38: #{tpu_custom_call.1} parent=35 // pred_check_branch
          %591 = sbr.rel (%p589) target = $region40
        $region39: #{tpu_custom_call.1} parent=35 // pred_region
          %s592 = sand.u32 %s32, 1
          %s593 = scalar_lea.sflag [#allocation4], %s592
          %s594 = sand.u32 %s54, 1
          %s595 = smul.addr %s594, 8
          %s596 = scalar_lea.vmem [#allocation3], %s595
          %s598 = ssub.s32 128, 128
          %599 = vsyncadd %s593, %s598
          %s600 = smul.addr %s39, 2
          %s601 = smul.addr %s600, 64
          %s602 = scalar_lea.hbm %s0, %s601
          %s603 = sshll.u32 %s596, 4
          %s604 = int_to_ptr.vmem [resolvable:$true] %s603
          %609 = dma.hbm_to_vmem [thread:$0]  %s602, 128, %s604, %s593, 64, 64, 4
        $region40: #{tpu_custom_call.1} parent=35 // pred_fallthru
          _
        // Predicated region
        $region41: #{tpu_custom_call.1} parent=35 // pred_check
          %p610 = pneg %p153
        $region42: #{tpu_custom_call.1} parent=35 // pred_check_branch
          %612 = sbr.rel (%p610) target = $region44
        $region43: #{tpu_custom_call.1} parent=35 // pred_region
          %s613 = sand.u32 %s32, 1
          %s614 = scalar_lea.sflag [#allocation4], %s613
          %s615 = sand.u32 %s143, 1
          %s616 = scalar_lea.vmem [#allocation11], %s615
          %s618 = ssub.s32 16, 16
          %619 = vsyncadd %s614, %s618
          %s620 = smul.addr %s40, 16
          %s621 = scalar_lea.hbm %s4, %s620
          %s623 = sshll.u32 %s616, 4
          %s624 = int_to_ptr.vmem [resolvable:$true] %s623
          %626 = dma.hbm_to_vmem [thread:$0]  %s621, 16, %s624, %s614
        $region44: #{tpu_custom_call.1} parent=35 // pred_fallthru
          _
        // Predicated region
        $region45: #{tpu_custom_call.1} parent=35 // pred_check
          %p627 = pneg %p179
        $region46: #{tpu_custom_call.1} parent=35 // pred_check_branch
          %629 = sbr.rel (%p627) target = $region48
        $region47: #{tpu_custom_call.1} parent=35 // pred_region
          %s630 = sand.u32 %s32, 1
          %s631 = scalar_lea.sflag [#allocation4], %s630
          %s632 = sand.u32 %s169, 1
          %s633 = scalar_lea.vmem [#allocation12], %s632
          %s635 = ssub.s32 16, 16
          %636 = vsyncadd %s631, %s635
          %s637 = smul.addr %s40, 16
          %s638 = scalar_lea.hbm %s5, %s637
          %s640 = sshll.u32 %s633, 4
          %s641 = int_to_ptr.vmem [resolvable:$true] %s640
          %643 = dma.hbm_to_vmem [thread:$0]  %s638, 16, %s641, %s631
        $region48: #{tpu_custom_call.1} parent=35 // pred_fallthru
          _
        // Predicated region
        $region49: #{tpu_custom_call.1} parent=35 // pred_check
          %p644 = pneg %p205
        $region50: #{tpu_custom_call.1} parent=35 // pred_check_branch
          %646 = sbr.rel (%p644) target = $region52
        $region51: #{tpu_custom_call.1} parent=35 // pred_region
          %s647 = sand.u32 %s32, 1
          %s648 = scalar_lea.sflag [#allocation4], %s647
          %s649 = sand.u32 %s195, 1
          %s650 = smul.addr %s649, 16
          %s651 = scalar_lea.vmem [#allocation13], %s650
          %s653 = ssub.s32 256, 256
          %654 = vsyncadd %s648, %s653
          %s655 = smul.addr %s40, 4
          %s656 = smul.addr %s655, 64
          %s657 = scalar_lea.hbm %s6, %s656
          %s658 = sshll.u32 %s651, 4
          %s659 = int_to_ptr.vmem [resolvable:$true] %s658
          %664 = dma.hbm_to_vmem [thread:$0]  %s657, 256, %s659, %s648, 64, 64, 4
        $region52: #{tpu_custom_call.1} parent=35 // pred_fallthru
          _
        // Predicated region
        $region53: #{tpu_custom_call.1} parent=35 // pred_check
          %p665 = pneg %p231
        $region54: #{tpu_custom_call.1} parent=35 // pred_check_branch
          %667 = sbr.rel (%p665) target = $region56
        $region55: #{tpu_custom_call.1} parent=35 // pred_region
          %s668 = sand.u32 %s32, 1
          %s669 = scalar_lea.sflag [#allocation4], %s668
          %s670 = sand.u32 %s221, 1
          %s671 = scalar_lea.vmem [#allocation14], %s670
          %s673 = ssub.s32 16, 16
          %674 = vsyncadd %s669, %s673
          %s675 = smul.addr %s40, 16
          %s676 = scalar_lea.hbm %s7, %s675
          %s678 = sshll.u32 %s671, 4
          %s679 = int_to_ptr.vmem [resolvable:$true] %s678
          %681 = dma.hbm_to_vmem [thread:$0]  %s676, 16, %s679, %s669
        $region56: #{tpu_custom_call.1} parent=35 // pred_fallthru
          _
        // Predicated region
        $region57: #{tpu_custom_call.1} parent=35 // pred_check
          %p682 = pneg %p257
        $region58: #{tpu_custom_call.1} parent=35 // pred_check_branch
          %684 = sbr.rel (%p682) target = $region60
        $region59: #{tpu_custom_call.1} parent=35 // pred_region
          %s685 = sand.u32 %s32, 1
          %s686 = scalar_lea.sflag [#allocation4], %s685
          %s687 = sand.u32 %s247, 1
          %s688 = smul.addr %s687, 16
          %s689 = scalar_lea.vmem [#allocation15], %s688
          %s691 = ssub.s32 256, 256
          %692 = vsyncadd %s686, %s691
          %s693 = smul.addr %s40, 4
          %s694 = smul.addr %s693, 64
          %s695 = scalar_lea.hbm %s8, %s694
          %s696 = sshll.u32 %s689, 4
          %s697 = int_to_ptr.vmem [resolvable:$true] %s696
          %702 = dma.hbm_to_vmem [thread:$0]  %s695, 256, %s697, %s686, 64, 64, 4
        $region60: #{tpu_custom_call.1} parent=35 // pred_fallthru
          _
        // Predicated region
        $region61: #{tpu_custom_call.1} parent=35 // pred_check
          %p703 = pneg %p283
        $region62: #{tpu_custom_call.1} parent=35 // pred_check_branch
          %705 = sbr.rel (%p703) target = $region64
        $region63: #{tpu_custom_call.1} parent=35 // pred_region
          %s706 = sand.u32 %s32, 1
          %s707 = scalar_lea.sflag [#allocation4], %s706
          %s708 = sand.u32 %s273, 1
          %s709 = scalar_lea.vmem [#allocation16], %s708
          %s711 = ssub.s32 16, 16
          %712 = vsyncadd %s707, %s711
          %s713 = smul.addr %s40, 16
          %s714 = scalar_lea.hbm %s9, %s713
          %s716 = sshll.u32 %s709, 4
          %s717 = int_to_ptr.vmem [resolvable:$true] %s716
          %719 = dma.hbm_to_vmem [thread:$0]  %s714, 16, %s717, %s707
        $region64: #{tpu_custom_call.1} parent=35 // pred_fallthru
          _
        // Predicated region
        $region65: #{tpu_custom_call.1} parent=35 // pred_check
          %p720 = pneg %p309
        $region66: #{tpu_custom_call.1} parent=35 // pred_check_branch
          %722 = sbr.rel (%p720) target = $region68
        $region67: #{tpu_custom_call.1} parent=35 // pred_region
          %s723 = sand.u32 %s32, 1
          %s724 = scalar_lea.sflag [#allocation4], %s723
          %s725 = sand.u32 %s299, 1
          %s726 = scalar_lea.vmem [#allocation17], %s725
          %s728 = ssub.s32 16, 16
          %729 = vsyncadd %s724, %s728
          %s730 = smul.addr %s40, 16
          %s731 = scalar_lea.hbm %s10, %s730
          %s733 = sshll.u32 %s726, 4
          %s734 = int_to_ptr.vmem [resolvable:$true] %s733
          %736 = dma.hbm_to_vmem [thread:$0]  %s731, 16, %s734, %s724
        $region68: #{tpu_custom_call.1} parent=35 // pred_fallthru
          _
        // Predicated region
        $region69: #{tpu_custom_call.1} parent=35 // pred_check
          %p737 = pneg %p335
        $region70: #{tpu_custom_call.1} parent=35 // pred_check_branch
          %739 = sbr.rel (%p737) target = $region72
        $region71: #{tpu_custom_call.1} parent=35 // pred_region
          %s740 = sand.u32 %s32, 1
          %s741 = scalar_lea.sflag [#allocation4], %s740
          %s742 = sand.u32 %s325, 1
          %s743 = scalar_lea.vmem [#allocation18], %s742
          %s745 = ssub.s32 16, 16
          %746 = vsyncadd %s741, %s745
          %s747 = smul.addr %s40, 16
          %s748 = scalar_lea.hbm %s11, %s747
          %s750 = sshll.u32 %s743, 4
          %s751 = int_to_ptr.vmem [resolvable:$true] %s750
          %753 = dma.hbm_to_vmem [thread:$0]  %s748, 16, %s751, %s741
        $region72: #{tpu_custom_call.1} parent=35 // pred_fallthru
          _
        // Predicated region
        $region73: #{tpu_custom_call.1} parent=35 // pred_check
          %p754 = pneg %p361
        $region74: #{tpu_custom_call.1} parent=35 // pred_check_branch
          %756 = sbr.rel (%p754) target = $region76
        $region75: #{tpu_custom_call.1} parent=35 // pred_region
          %s757 = sand.u32 %s32, 1
          %s758 = scalar_lea.sflag [#allocation4], %s757
          %s759 = sand.u32 %s351, 1
          %s760 = smul.addr %s759, 16
          %s761 = scalar_lea.vmem [#allocation19], %s760
          %s763 = ssub.s32 256, 256
          %764 = vsyncadd %s758, %s763
          %s765 = smul.addr %s40, 4
          %s766 = smul.addr %s765, 64
          %s767 = scalar_lea.hbm %s12, %s766
          %s768 = sshll.u32 %s761, 4
          %s769 = int_to_ptr.vmem [resolvable:$true] %s768
          %774 = dma.hbm_to_vmem [thread:$0]  %s767, 256, %s769, %s758, 64, 64, 4
        $region76: #{tpu_custom_call.1} parent=35 // pred_fallthru
          _
        // Predicated region
        $region77: #{tpu_custom_call.1} parent=35 // pred_check
          %p775 = pneg %p387
        $region78: #{tpu_custom_call.1} parent=35 // pred_check_branch
          %777 = sbr.rel (%p775) target = $region80
        $region79: #{tpu_custom_call.1} parent=35 // pred_region
          %s778 = sand.u32 %s32, 1
          %s779 = scalar_lea.sflag [#allocation4], %s778
          %s780 = sand.u32 %s377, 1
          %s781 = scalar_lea.vmem [#allocation20], %s780
          %s783 = ssub.s32 16, 16
          %784 = vsyncadd %s779, %s783
          %s785 = smul.addr %s40, 16
          %s786 = scalar_lea.hbm %s13, %s785
          %s788 = sshll.u32 %s781, 4
          %s789 = int_to_ptr.vmem [resolvable:$true] %s788
          %791 = dma.hbm_to_vmem [thread:$0]  %s786, 16, %s789, %s779
        $region80: #{tpu_custom_call.1} parent=35 // pred_fallthru
          _
        // Predicated region
        $region81: #{tpu_custom_call.1} parent=35 // pred_check
          %p792 = pneg %p413
        $region82: #{tpu_custom_call.1} parent=35 // pred_check_branch
          %794 = sbr.rel (%p792) target = $region84
        $region83: #{tpu_custom_call.1} parent=35 // pred_region
          %s795 = sand.u32 %s32, 1
          %s796 = scalar_lea.sflag [#allocation4], %s795
          %s797 = sand.u32 %s403, 1
          %s798 = smul.addr %s797, 64
          %s799 = scalar_lea.vmem [#allocation21], %s798
          %s801 = ssub.s32 1024, 1024
          %802 = vsyncadd %s796, %s801
          %s803 = smul.addr %s40, 16
          %s804 = smul.addr %s803, 64
          %s805 = scalar_lea.hbm %s14, %s804
          %s806 = sshll.u32 %s799, 4
          %s807 = int_to_ptr.vmem [resolvable:$true] %s806
          %812 = dma.hbm_to_vmem [thread:$0]  %s805, 1024, %s807, %s796, 64, 64, 4
        $region84: #{tpu_custom_call.1} parent=35 // pred_fallthru
          _
        // Predicated region
        $region85: #{tpu_custom_call.1} parent=35 // pred_check
          %p813 = pneg %p439
        $region86: #{tpu_custom_call.1} parent=35 // pred_check_branch
          %815 = sbr.rel (%p813) target = $region88
        $region87: #{tpu_custom_call.1} parent=35 // pred_region
          %s816 = sand.u32 %s32, 1
          %s817 = scalar_lea.sflag [#allocation4], %s816
          %s818 = sand.u32 %s429, 1
          %s819 = scalar_lea.vmem [#allocation22], %s818
          %s821 = ssub.s32 16, 16
          %822 = vsyncadd %s817, %s821
          %s823 = smul.addr %s40, 16
          %s824 = scalar_lea.hbm %s15, %s823
          %s826 = sshll.u32 %s819, 4
          %s827 = int_to_ptr.vmem [resolvable:$true] %s826
          %829 = dma.hbm_to_vmem [thread:$0]  %s824, 16, %s827, %s817
        $region88: #{tpu_custom_call.1} parent=35 // pred_fallthru
          _
      $region36: #{tpu_custom_call.1} parent=5 // pred_fallthru
        _
      %p830 = scmp.le.s32.totalorder 1, %s32
      %p831 = scmp.lt.s32.totalorder %s32, 5
      %p832 = pnand %p830, %p831
      %p833 = pneg %p832
      // Predicated region
      $region89: #{tpu_custom_call.1} parent=5 // pred_check
        _
      $region90: #{tpu_custom_call.1} parent=5 // pred_check_branch
        %835 = sbr.rel (%p832) target = $region92
      $region91: #{tpu_custom_call.1} parent=5 // pred_region
        %s836 = ssub.s32 %s32, 1
        %s837 = sand.u32 %s37, 1
        %s838 = scalar_lea.sflag [#allocation4], %s837
        %s839 = sand.u32 %s57, 1
        %s840 = smul.addr %s839, 8
        %s841 = scalar_lea.vmem [#allocation3], %s840
        // Predicated region
        $region93: #{tpu_custom_call.1} parent=91 // pred_check
          %p842 = pneg %p70
        $region94: #{tpu_custom_call.1} parent=91 // pred_check_branch
          %844 = sbr.rel (%p842) target = $region96
        $region95: #{tpu_custom_call.1} parent=91 // pred_region
          %845 = dma.done %s838, 128
        $region96: #{tpu_custom_call.1} parent=91 // pred_fallthru
          _
        // Predicated region
        $region97: #{tpu_custom_call.1} parent=91 // pred_check
          %p846 = pneg %p91
        $region98: #{tpu_custom_call.1} parent=91 // pred_check_branch
          %848 = sbr.rel (%p846) target = $region100
        $region99: #{tpu_custom_call.1} parent=91 // pred_region
          %849 = dma.done [#allocation7], 512
        $region100: #{tpu_custom_call.1} parent=91 // pred_fallthru
          _
        // Predicated region
        $region101: #{tpu_custom_call.1} parent=91 // pred_check
          %p850 = pneg %p112
        $region102: #{tpu_custom_call.1} parent=91 // pred_check_branch
          %852 = sbr.rel (%p850) target = $region104
        $region103: #{tpu_custom_call.1} parent=91 // pred_region
          %853 = dma.done [#allocation7], 16
        $region104: #{tpu_custom_call.1} parent=91 // pred_fallthru
          _
        // Predicated region
        $region105: #{tpu_custom_call.1} parent=91 // pred_check
          %p854 = pneg %p133
        $region106: #{tpu_custom_call.1} parent=91 // pred_check_branch
          %856 = sbr.rel (%p854) target = $region108
        $region107: #{tpu_custom_call.1} parent=91 // pred_region
          %857 = dma.done [#allocation10], 16
        $region108: #{tpu_custom_call.1} parent=91 // pred_fallthru
          _
        %s858 = sand.u32 %s37, 1
        %s859 = scalar_lea.sflag [#allocation4], %s858
        %s860 = sand.u32 %s146, 1
        %s861 = scalar_lea.vmem [#allocation11], %s860
        // Predicated region
        $region109: #{tpu_custom_call.1} parent=91 // pred_check
          %p862 = pneg %p159
        $region110: #{tpu_custom_call.1} parent=91 // pred_check_branch
          %864 = sbr.rel (%p862) target = $region112
        $region111: #{tpu_custom_call.1} parent=91 // pred_region
          %865 = dma.done %s859, 16
        $region112: #{tpu_custom_call.1} parent=91 // pred_fallthru
          _
        %s866 = sand.u32 %s37, 1
        %s867 = scalar_lea.sflag [#allocation4], %s866
        %s868 = sand.u32 %s172, 1
        %s869 = scalar_lea.vmem [#allocation12], %s868
        // Predicated region
        $region113: #{tpu_custom_call.1} parent=91 // pred_check
          %p870 = pneg %p185
        $region114: #{tpu_custom_call.1} parent=91 // pred_check_branch
          %872 = sbr.rel (%p870) target = $region116
        $region115: #{tpu_custom_call.1} parent=91 // pred_region
          %873 = dma.done %s867, 16
        $region116: #{tpu_custom_call.1} parent=91 // pred_fallthru
          _
        %s874 = sand.u32 %s37, 1
        %s875 = scalar_lea.sflag [#allocation4], %s874
        %s876 = sand.u32 %s198, 1
        %s877 = smul.addr %s876, 16
        %s878 = scalar_lea.vmem [#allocation13], %s877
        // Predicated region
        $region117: #{tpu_custom_call.1} parent=91 // pred_check
          %p879 = pneg %p211
        $region118: #{tpu_custom_call.1} parent=91 // pred_check_branch
          %881 = sbr.rel (%p879) target = $region120
        $region119: #{tpu_custom_call.1} parent=91 // pred_region
          %882 = dma.done %s875, 256
        $region120: #{tpu_custom_call.1} parent=91 // pred_fallthru
          _
        %s883 = sand.u32 %s37, 1
        %s884 = scalar_lea.sflag [#allocation4], %s883
        %s885 = sand.u32 %s224, 1
        %s886 = scalar_lea.vmem [#allocation14], %s885
        // Predicated region
        $region121: #{tpu_custom_call.1} parent=91 // pred_check
          %p887 = pneg %p237
        $region122: #{tpu_custom_call.1} parent=91 // pred_check_branch
          %889 = sbr.rel (%p887) target = $region124
        $region123: #{tpu_custom_call.1} parent=91 // pred_region
          %890 = dma.done %s884, 16
        $region124: #{tpu_custom_call.1} parent=91 // pred_fallthru
          _
        %s891 = sand.u32 %s37, 1
        %s892 = scalar_lea.sflag [#allocation4], %s891
        %s893 = sand.u32 %s250, 1
        %s894 = smul.addr %s893, 16
        %s895 = scalar_lea.vmem [#allocation15], %s894
        // Predicated region
        $region125: #{tpu_custom_call.1} parent=91 // pred_check
          %p896 = pneg %p263
        $region126: #{tpu_custom_call.1} parent=91 // pred_check_branch
          %898 = sbr.rel (%p896) target = $region128
        $region127: #{tpu_custom_call.1} parent=91 // pred_region
          %899 = dma.done %s892, 256
        $region128: #{tpu_custom_call.1} parent=91 // pred_fallthru
          _
        %s900 = sand.u32 %s37, 1
        %s901 = scalar_lea.sflag [#allocation4], %s900
        %s902 = sand.u32 %s276, 1
        %s903 = scalar_lea.vmem [#allocation16], %s902
        // Predicated region
        $region129: #{tpu_custom_call.1} parent=91 // pred_check
          %p904 = pneg %p289
        $region130: #{tpu_custom_call.1} parent=91 // pred_check_branch
          %906 = sbr.rel (%p904) target = $region132
        $region131: #{tpu_custom_call.1} parent=91 // pred_region
          %907 = dma.done %s901, 16
        $region132: #{tpu_custom_call.1} parent=91 // pred_fallthru
          _
        %s908 = sand.u32 %s37, 1
        %s909 = scalar_lea.sflag [#allocation4], %s908
        %s910 = sand.u32 %s302, 1
        %s911 = scalar_lea.vmem [#allocation17], %s910
        // Predicated region
        $region133: #{tpu_custom_call.1} parent=91 // pred_check
          %p912 = pneg %p315
        $region134: #{tpu_custom_call.1} parent=91 // pred_check_branch
          %914 = sbr.rel (%p912) target = $region136
        $region135: #{tpu_custom_call.1} parent=91 // pred_region
          %915 = dma.done %s909, 16
        $region136: #{tpu_custom_call.1} parent=91 // pred_fallthru
          _
        %s916 = sand.u32 %s37, 1
        %s917 = scalar_lea.sflag [#allocation4], %s916
        %s918 = sand.u32 %s328, 1
        %s919 = scalar_lea.vmem [#allocation18], %s918
        // Predicated region
        $region137: #{tpu_custom_call.1} parent=91 // pred_check
          %p920 = pneg %p341
        $region138: #{tpu_custom_call.1} parent=91 // pred_check_branch
          %922 = sbr.rel (%p920) target = $region140
        $region139: #{tpu_custom_call.1} parent=91 // pred_region
          %923 = dma.done %s917, 16
        $region140: #{tpu_custom_call.1} parent=91 // pred_fallthru
          _
        %s924 = sand.u32 %s37, 1
        %s925 = scalar_lea.sflag [#allocation4], %s924
        %s926 = sand.u32 %s354, 1
        %s927 = smul.addr %s926, 16
        %s928 = scalar_lea.vmem [#allocation19], %s927
        // Predicated region
        $region141: #{tpu_custom_call.1} parent=91 // pred_check
          %p929 = pneg %p367
        $region142: #{tpu_custom_call.1} parent=91 // pred_check_branch
          %931 = sbr.rel (%p929) target = $region144
        $region143: #{tpu_custom_call.1} parent=91 // pred_region
          %932 = dma.done %s925, 256
        $region144: #{tpu_custom_call.1} parent=91 // pred_fallthru
          _
        %s933 = sand.u32 %s37, 1
        %s934 = scalar_lea.sflag [#allocation4], %s933
        %s935 = sand.u32 %s380, 1
        %s936 = scalar_lea.vmem [#allocation20], %s935
        // Predicated region
        $region145: #{tpu_custom_call.1} parent=91 // pred_check
          %p937 = pneg %p393
        $region146: #{tpu_custom_call.1} parent=91 // pred_check_branch
          %939 = sbr.rel (%p937) target = $region148
        $region147: #{tpu_custom_call.1} parent=91 // pred_region
          %940 = dma.done %s934, 16
        $region148: #{tpu_custom_call.1} parent=91 // pred_fallthru
          _
        %s941 = sand.u32 %s37, 1
        %s942 = scalar_lea.sflag [#allocation4], %s941
        %s943 = sand.u32 %s406, 1
        %s944 = smul.addr %s943, 64
        %s945 = scalar_lea.vmem [#allocation21], %s944
        // Predicated region
        $region149: #{tpu_custom_call.1} parent=91 // pred_check
          %p946 = pneg %p419
        $region150: #{tpu_custom_call.1} parent=91 // pred_check_branch
          %948 = sbr.rel (%p946) target = $region152
        $region151: #{tpu_custom_call.1} parent=91 // pred_region
          %949 = dma.done %s942, 1024
        $region152: #{tpu_custom_call.1} parent=91 // pred_fallthru
          _
        %s950 = sand.u32 %s37, 1
        %s951 = scalar_lea.sflag [#allocation4], %s950
        %s952 = sand.u32 %s432, 1
        %s953 = scalar_lea.vmem [#allocation22], %s952
        // Predicated region
        $region153: #{tpu_custom_call.1} parent=91 // pred_check
          %p954 = pneg %p445
        $region154: #{tpu_custom_call.1} parent=91 // pred_check_branch
          %956 = sbr.rel (%p954) target = $region156
        $region155: #{tpu_custom_call.1} parent=91 // pred_region
          %957 = dma.done %s951, 16
        $region156: #{tpu_custom_call.1} parent=91 // pred_fallthru
          _
        // Predicated region
        $region157: #{tpu_custom_call.1} parent=91 // pred_check
          %p958 = pneg %p466
        $region158: #{tpu_custom_call.1} parent=91 // pred_check_branch
          %960 = sbr.rel (%p958) target = $region160
        $region159: #{tpu_custom_call.1} parent=91 // pred_region
          %961 = dma.done [#allocation7], 16
        $region160: #{tpu_custom_call.1} parent=91 // pred_fallthru
          _
        // Predicated region
        $region161: #{tpu_custom_call.1} parent=91 // pred_check
          %p962 = pneg %p487
        $region162: #{tpu_custom_call.1} parent=91 // pred_check_branch
          %964 = sbr.rel (%p962) target = $region164
        $region163: #{tpu_custom_call.1} parent=91 // pred_region
          %965 = dma.done [#allocation10], 16
        $region164: #{tpu_custom_call.1} parent=91 // pred_fallthru
          _
        %s966 = sand.u32 %s37, 1
        %s967 = scalar_lea.sflag [#allocation4], %s966
        %s968 = sand.u32 %s57, 1
        %s969 = smul.addr %s968, 8
        %s970 = scalar_lea.vmem [#allocation3], %s969
        %p971 = pneg %p70
        %p972 = pneg %p67
        %p973 = pneg %p91
        %p974 = pneg %p88
        %p975 = pneg %p112
        %p976 = pneg %p109
        %p977 = pneg %p133
        %p978 = pneg %p130
        %s979 = sand.u32 %s37, 1
        %s980 = scalar_lea.sflag [#allocation4], %s979
        %s981 = sand.u32 %s146, 1
        %s982 = scalar_lea.vmem [#allocation11], %s981
        %p983 = pneg %p159
        %p984 = pneg %p156
        %s985 = sand.u32 %s37, 1
        %s986 = scalar_lea.sflag [#allocation4], %s985
        %s987 = sand.u32 %s172, 1
        %s988 = scalar_lea.vmem [#allocation12], %s987
        %p989 = pneg %p185
        %p990 = pneg %p182
        %s991 = sand.u32 %s37, 1
        %s992 = scalar_lea.sflag [#allocation4], %s991
        %s993 = sand.u32 %s198, 1
        %s994 = smul.addr %s993, 16
        %s995 = scalar_lea.vmem [#allocation13], %s994
        %p996 = pneg %p211
        %p997 = pneg %p208
        %s998 = sand.u32 %s37, 1
        %s999 = scalar_lea.sflag [#allocation4], %s998
        %s1000 = sand.u32 %s224, 1
        %s1001 = scalar_lea.vmem [#allocation14], %s1000
        %p1002 = pneg %p237
        %p1003 = pneg %p234
        %s1004 = sand.u32 %s37, 1
        %s1005 = scalar_lea.sflag [#allocation4], %s1004
        %s1006 = sand.u32 %s250, 1
        %s1007 = smul.addr %s1006, 16
        %s1008 = scalar_lea.vmem [#allocation15], %s1007
        %p1009 = pneg %p263
        %p1010 = pneg %p260
        %s1011 = sand.u32 %s37, 1
        %s1012 = scalar_lea.sflag [#allocation4], %s1011
        %s1013 = sand.u32 %s276, 1
        %s1014 = scalar_lea.vmem [#allocation16], %s1013
        %p1015 = pneg %p289
        %p1016 = pneg %p286
        %s1017 = sand.u32 %s37, 1
        %s1018 = scalar_lea.sflag [#allocation4], %s1017
        %s1019 = sand.u32 %s302, 1
        %s1020 = scalar_lea.vmem [#allocation17], %s1019
        %p1021 = pneg %p315
        %p1022 = pneg %p312
        %s1023 = sand.u32 %s37, 1
        %s1024 = scalar_lea.sflag [#allocation4], %s1023
        %s1025 = sand.u32 %s328, 1
        %s1026 = scalar_lea.vmem [#allocation18], %s1025
        %p1027 = pneg %p341
        %p1028 = pneg %p338
        %s1029 = sand.u32 %s37, 1
        %s1030 = scalar_lea.sflag [#allocation4], %s1029
        %s1031 = sand.u32 %s354, 1
        %s1032 = smul.addr %s1031, 16
        %s1033 = scalar_lea.vmem [#allocation19], %s1032
        %p1034 = pneg %p367
        %p1035 = pneg %p364
        %s1036 = sand.u32 %s37, 1
        %s1037 = scalar_lea.sflag [#allocation4], %s1036
        %s1038 = sand.u32 %s380, 1
        %s1039 = scalar_lea.vmem [#allocation20], %s1038
        %p1040 = pneg %p393
        %p1041 = pneg %p390
        %s1042 = sand.u32 %s37, 1
        %s1043 = scalar_lea.sflag [#allocation4], %s1042
        %s1044 = sand.u32 %s406, 1
        %s1045 = smul.addr %s1044, 64
        %s1046 = scalar_lea.vmem [#allocation21], %s1045
        %p1047 = pneg %p419
        %p1048 = pneg %p416
        %s1049 = sand.u32 %s37, 1
        %s1050 = scalar_lea.sflag [#allocation4], %s1049
        %s1051 = sand.u32 %s432, 1
        %s1052 = scalar_lea.vmem [#allocation22], %s1051
        %p1053 = pneg %p445
        %p1054 = pneg %p442
        %p1055 = pneg %p466
        %p1056 = pneg %p463
        %p1057 = pneg %p487
        %p1058 = pneg %p484
        %p1059 = pneg %p513
        %p1060 = pneg %p510
        %s1061 = sand.u32 %s500, 1
        %s1062 = scalar_lea.sflag [#allocation5], %s1061
        %s1063 = sand.u32 %s500, 1
        %s1064 = smul.addr %s1063, 24
        %s1065 = scalar_lea.vmem [#allocation25], %s1064
        %p1067 = scmp.eq.s32.totalorder %s42, 0
        // Predicated region
        $region165: #{tpu_custom_call.1} parent=91 // pred_check
          %p1068 = pneg %p1067
        $region166: #{tpu_custom_call.1} parent=91 // pred_check_branch
          %1070 = sbr.rel (%p1068) target = $region168
        $region167: #{tpu_custom_call.1} parent=91 // pred_region
          %v1071 = vld [vmem:[%s841] sm:$0xf]
          %v1072 = vld [vmem:[%s841 + $0x4] sm:$0xf]
          %v1073 = vld [vmem:[#allocation6] sm:$0xf]
          %v1074 = vld [vmem:[#allocation6 + $0x4] sm:$0xf]
          %v1075 = vld [vmem:[#allocation6 + $0x8] sm:$0xf]
          %v1076 = vld [vmem:[#allocation6 + $0xc] sm:$0xf]
          %v1077 = vld [vmem:[#allocation6 + $0x10] sm:$0xf]
          %v1078 = vld [vmem:[#allocation6 + $0x14] sm:$0xf]
          %v1079 = vld [vmem:[#allocation6 + $0x18] sm:$0xf]
          %v1080 = vld [vmem:[#allocation6 + $0x1c] sm:$0xf]
          %v1081 = vld [vmem:[#allocation8] sm:$0x1]
          %v1083 = vlaneseq
          %v1084 = vshrl.u32 %v1083, 7
          %v1085 = vsub.s32 0, %v1084
          %v1086 = vrot.slane %v1081, %v1085
          %v1090 = vunpack.c.l.b16 %v1071
          %v1091 = vunpack.c.l.b16 %v1072
          %v1092 = vpack.c.b16 %v1091, %v1090
          %v1101 = vunpack.c.l.b16 %v1073
          %v1102 = vunpack.c.l.b16 %v1074
          %v1103 = vunpack.c.l.b16 %v1075
          %v1104 = vunpack.c.l.b16 %v1076
          %v1105 = vunpack.c.l.b16 %v1077
          %v1106 = vunpack.c.l.b16 %v1078
          %v1107 = vunpack.c.l.b16 %v1079
          %v1108 = vunpack.c.l.b16 %v1080
          %v1109 = vpack.c.b16 %v1102, %v1101
          %v1110 = vpack.c.b16 %v1104, %v1103
          %v1111 = vpack.c.b16 %v1106, %v1105
          %v1112 = vpack.c.b16 %v1108, %v1107
          %vm1117 = vcmask 523264
          %v1119 = vsel %vm1117, %v1092, 0
          %1121 = vmatprep.subr.bf16.mxu0 0
          %1122 = vmatpush1.bf16.msra.mxu0 %v1109
          %1123 = vmatprep.subr.bf16.mxu0 0
          %1124 = vmatpush1.bf16.msra.mxu0 %v1110
          %1125 = vmatprep.subr.bf16.mxu0 0
          %1126 = vmatpush1.bf16.msra.mxu0 %v1111
          %1127 = vmatprep.subr.bf16.mxu0 0
          %1128 = vmatpush1.bf16.msra.mxu0 %v1112
          %1129 = vmatprep.subr.bf16.mxu0 0
          %1130 = vmatpush1.bf16.msra.mxu0 0
          %1131 = vmatprep.subr.bf16.mxu0 0
          %1132 = vmatpush1.bf16.msra.mxu0 0
          %1133 = vmatprep.subr.bf16.mxu0 0
          %1134 = vmatpush1.bf16.msra.mxu0 0
          %1135 = vmatprep.subr.bf16.mxu0 0
          %1136 = vmatpush1.bf16.msra.mxu0 0
          %1137 = vmatprep.subr.bf16.mxu0 0
          %1138 = vmatpush1.bf16.msra.mxu0 0
          %1139 = vmatprep.subr.bf16.mxu0 0
          %1140 = vmatpush1.bf16.msra.mxu0 0
          %1141 = vmatprep.subr.bf16.mxu0 0
          %1142 = vmatpush1.bf16.msra.mxu0 0
          %1143 = vmatprep.subr.bf16.mxu0 0
          %1144 = vmatpush1.bf16.msra.mxu0 0
          %1145 = vmatprep.subr.bf16.mxu0 0
          %1146 = vmatpush1.bf16.msra.mxu0 0
          %1147 = vmatprep.subr.bf16.mxu0 0
          %1148 = vmatpush1.bf16.msra.mxu0 0
          %1149 = vmatprep.subr.bf16.mxu0 0
          %1150 = vmatpush1.bf16.msra.mxu0 0
          %1151 = vmatprep.subr.bf16.mxu0 0
          %1152 = vmatpush1.bf16.msra.mxu0 0
          %1153 = vmatprep.mubr.bf16.mxu0 0
          %1154 = vmatmul.mubr.bf16.gmra.mrb[0].mxu0 %v1119
          %v1155 = vpop.f32.mrb[0].mxu0
          %v1156 = vadd.f32 %v1086, %v1155
          %v1157 = vpop.f32.mrb[0].mxu0
          %v1158 = vpop.f32.mrb[0].mxu0
          %v1159 = vadd.f32 %v1086, %v1158
          %v1160 = vpop.f32.mrb[0].mxu0
          %1161 = vdwg.mxu0
          %v1162 = vld [vmem:[#allocation9] sm:$0x1]
          %vm1163 = vcmask 253952
          %1164 = vst.msk [vmem:[#allocation2] sm:$0x1] %vm1163, %v1162
          %vm1165 = vcmask 261120
          %1166 = vst.msk [vmem:[#allocation2 + $0x1] sm:$0xff] %vm1165, %v1156
          %1167 = vst.msk [vmem:[#allocation2 + $0x9] sm:$0xff] %vm1165, %v1159
        $region168: #{tpu_custom_call.1} parent=91 // pred_fallthru
          _
        %v1168 = vld [vmem:[#allocation2] sm:$0xff]
        %v1169 = vld [vmem:[#allocation2 + $0x8] sm:$0xff]
        %v1170 = vld [vmem:[#allocation2 + $0x10] sm:$0x1]
        %v1171 = vld [vmem:[%s861] sm:$0x1]
        %v1172 = vld [vmem:[%s869] sm:$0x1]
        %vm1173 = vcmask 261120
        %v1174 = vsel %vm1173, %v1168, 0.0
        %1175 = vadd.xlane.f32.xlu0 %v1174
        %v1176 = vpop.xlane.xlu0 %1175
        %v1177 = vsel %vm1173, %v1169, 0.0
        %1178 = vadd.xlane.f32.xlu0 %v1177
        %v1179 = vpop.xlane.xlu0 %1178
        %vm1180 = vcmask 253952
        %v1181 = vsel %vm1180, %v1170, 0.0
        %1182 = vadd.xlane.f32.xlu0 %v1181
        %v1183 = vpop.xlane.xlu0 %1182
        %v1184 = vrcp.pop 32.0
        %v1185 = vmul.f32 %v1176, %v1184
        %v1186 = vmul.f32 %v1179, %v1184
        %v1187 = vmul.f32 %v1183, %v1184
        %v1188 = vsub.f32 %v1168, %v1185
        %v1189 = vsub.f32 %v1169, %v1186
        %v1190 = vsub.f32 %v1170, %v1187
        %v1191 = vmul.f32 %v1188, %v1188
        %v1192 = vmul.f32 %v1189, %v1189
        %v1193 = vmul.f32 %v1190, %v1190
        %v1194 = vsel %vm1173, %v1191, 0.0
        %1195 = vadd.xlane.f32.xlu0 %v1194
        %v1196 = vpop.xlane.xlu0 %1195
        %v1197 = vsel %vm1173, %v1192, 0.0
        %1198 = vadd.xlane.f32.xlu0 %v1197
        %v1199 = vpop.xlane.xlu0 %1198
        %v1200 = vsel %vm1180, %v1193, 0.0
        %1201 = vadd.xlane.f32.xlu0 %v1200
        %v1202 = vpop.xlane.xlu0 %1201
        %v1203 = vmul.f32 %v1196, %v1184
        %v1204 = vmul.f32 %v1199, %v1184
        %v1205 = vmul.f32 %v1202, %v1184
        %v1206 = vadd.f32 %v1203, 1e-05
        %v1207 = vadd.f32 %v1204, 1e-05
        %v1208 = vadd.f32 %v1205, 1e-05
        %v1209 = vrsqrt.pop %v1206
        %v1210 = vrsqrt.pop %v1207
        %v1211 = vrsqrt.pop %v1208
        %v1212 = vmul.f32 %v1188, %v1209
        %v1213 = vmul.f32 %v1189, %v1210
        %v1214 = vmul.f32 %v1190, %v1211
        %v1216 = vlaneseq
        %v1217 = vshrl.u32 %v1216, 7
        %v1218 = vsub.s32 0, %v1217
        %v1219 = vrot.slane %v1171, %v1218
        %v1221 = vmul.f32 %v1212, %v1219
        %v1222 = vmul.f32 %v1213, %v1219
        %v1223 = vmul.f32 %v1214, %v1219
        %v1225 = vlaneseq
        %v1226 = vshrl.u32 %v1225, 7
        %v1227 = vsub.s32 0, %v1226
        %v1228 = vrot.slane %v1172, %v1227
        %v1230 = vadd.f32 %v1221, %v1228
        %v1231 = vadd.f32 %v1222, %v1228
        %v1232 = vadd.f32 %v1223, %v1228
        %v1233 = vpack.c.bf16 %v1231, %v1230
        %v1234 = vpack.c.bf16 %v1232, %v1232
        %v1235 = vld [vmem:[%s878] sm:$0xf]
        %v1236 = vld [vmem:[%s878 + $0x4] sm:$0xf]
        %v1237 = vld [vmem:[%s878 + $0x8] sm:$0xf]
        %v1238 = vld [vmem:[%s878 + $0xc] sm:$0xf]
        %v1239 = vld [vmem:[%s886] sm:$0x1]
        %v1241 = vlaneseq
        %v1242 = vshrl.u32 %v1241, 7
        %v1243 = vsub.s32 0, %v1242
        %v1244 = vrot.slane %v1239, %v1243
        %v1250 = vunpack.c.l.b16 %v1235
        %v1251 = vunpack.c.l.b16 %v1236
        %v1252 = vunpack.c.l.b16 %v1237
        %v1253 = vunpack.c.l.b16 %v1238
        %v1254 = vpack.c.b16 %v1251, %v1250
        %v1255 = vpack.c.b16 %v1253, %v1252
        %v1259 = vsel %vm1173, %v1233, 0
        %v1262 = vsel %vm1173, %v1234, 0
        %1264 = vmatprep.subr.bf16.mxu0 0
        %1265 = vmatpush1.bf16.msra.mxu0 %v1254
        %1266 = vmatprep.subr.bf16.mxu0 0
        %1267 = vmatpush1.bf16.msra.mxu0 %v1255
        %1268 = vmatprep.subr.bf16.mxu0 0
        %1269 = vmatpush1.bf16.msra.mxu0 0
        %1270 = vmatprep.subr.bf16.mxu0 0
        %1271 = vmatpush1.bf16.msra.mxu0 0
        %1272 = vmatprep.subr.bf16.mxu0 0
        %1273 = vmatpush1.bf16.msra.mxu0 0
        %1274 = vmatprep.subr.bf16.mxu0 0
        %1275 = vmatpush1.bf16.msra.mxu0 0
        %1276 = vmatprep.subr.bf16.mxu0 0
        %1277 = vmatpush1.bf16.msra.mxu0 0
        %1278 = vmatprep.subr.bf16.mxu0 0
        %1279 = vmatpush1.bf16.msra.mxu0 0
        %1280 = vmatprep.subr.bf16.mxu0 0
        %1281 = vmatpush1.bf16.msra.mxu0 0
        %1282 = vmatprep.subr.bf16.mxu0 0
        %1283 = vmatpush1.bf16.msra.mxu0 0
        %1284 = vmatprep.subr.bf16.mxu0 0
        %1285 = vmatpush1.bf16.msra.mxu0 0
        %1286 = vmatprep.subr.bf16.mxu0 0
        %1287 = vmatpush1.bf16.msra.mxu0 0
        %1288 = vmatprep.subr.bf16.mxu0 0
        %1289 = vmatpush1.bf16.msra.mxu0 0
        %1290 = vmatprep.subr.bf16.mxu0 0
        %1291 = vmatpush1.bf16.msra.mxu0 0
        %1292 = vmatprep.subr.bf16.mxu0 0
        %1293 = vmatpush1.bf16.msra.mxu0 0
        %1294 = vmatprep.subr.bf16.mxu0 0
        %1295 = vmatpush1.bf16.msra.mxu0 0
        %1296 = vmatprep.mubr.bf16.mxu0 0
        %1297 = vmatmul.mubr.bf16.gmra.mrb[0].mxu0 %v1259
        %v1298 = vpop.f32.mrb[0].mxu0
        %v1299 = vadd.f32 %v1244, %v1298
        %v1300 = vpop.f32.mrb[0].mxu0
        %v1301 = vpop.f32.mrb[0].mxu0
        %v1302 = vadd.f32 %v1244, %v1301
        %v1303 = vpop.f32.mrb[0].mxu0
        %1304 = vmatprep.mubr.bf16.mxu0 0
        %1305 = vmatmul.mubr.bf16.gmra.mrb[0].mxu0 %v1262
        %v1306 = vpop.f32.mrb[0].mxu0
        %v1307 = vadd.f32 %v1244, %v1306
        %v1308 = vpop.f32.mrb[0].mxu0
        %v1309 = vpop.f32.mrb[0].mxu0
        %v1310 = vpop.f32.mrb[0].mxu0
        %1311 = vdwg.mxu0
        %v1312 = vpack.c.bf16 %v1302, %v1299
        %v1313 = vpack.c.bf16 %v1307, %v1307
        %1316 = vrot.lane.b32.xlu0 %v1312, 120
        %v1317 = vpop.permute.xlu0 %1316
        %1318 = vrot.lane.b32.xlu0 %v1313, 120
        %v1319 = vpop.permute.xlu0 %1318
        %1320 = vrot.lane.b32.xlu0 %v1312, 112
        %v1321 = vpop.permute.xlu0 %1320
        %1322 = vrot.lane.b32.xlu0 %v1313, 112
        %v1323 = vpop.permute.xlu0 %1322
        %1324 = vrot.lane.b32.xlu0 %v1312, 104
        %v1325 = vpop.permute.xlu0 %1324
        %1326 = vrot.lane.b32.xlu0 %v1313, 104
        %v1327 = vpop.permute.xlu0 %1326
        %1328 = vrot.lane.b32.xlu0 %v1312, 96
        %v1329 = vpop.permute.xlu0 %1328
        %1330 = vrot.lane.b32.xlu0 %v1313, 96
        %v1331 = vpop.permute.xlu0 %1330
        %vm1332 = vcmask 64512
        %v1334 = vsel %vm1332, %v1312, 0
        %v1337 = vsel %vm1332, %v1313, 0
        %v1340 = vsel %vm1332, %v1329, 0
        %v1343 = vsel %vm1332, %v1331, 0
        %1345 = vmatprep.subr.bf16.mxu0 0
        %1346 = vmatpush1.bf16.xpose.msra.mxu0 %v1340
        %1347 = vmatprep.subr.bf16.mxu0 0
        %1348 = vmatpush1.bf16.xpose.msra.mxu0 %v1343
        %1349 = vmatprep.subr.bf16.mxu0 0
        %1350 = vmatpush1.bf16.xpose.msra.mxu0 0
        %1351 = vmatprep.subr.bf16.mxu0 0
        %1352 = vmatpush1.bf16.xpose.msra.mxu0 0
        %1353 = vmatprep.subr.bf16.mxu0 0
        %1354 = vmatpush1.bf16.xpose.msra.mxu0 0
        %1355 = vmatprep.subr.bf16.mxu0 0
        %1356 = vmatpush1.bf16.xpose.msra.mxu0 0
        %1357 = vmatprep.subr.bf16.mxu0 0
        %1358 = vmatpush1.bf16.xpose.msra.mxu0 0
        %1359 = vmatprep.subr.bf16.mxu0 0
        %1360 = vmatpush1.bf16.xpose.msra.mxu0 0
        %1361 = vmatprep.subr.bf16.mxu0 0
        %1362 = vmatpush1.bf16.xpose.msra.mxu0 0
        %1363 = vmatprep.subr.bf16.mxu0 0
        %1364 = vmatpush1.bf16.xpose.msra.mxu0 0
        %1365 = vmatprep.subr.bf16.mxu0 0
        %1366 = vmatpush1.bf16.xpose.msra.mxu0 0
        %1367 = vmatprep.subr.bf16.mxu0 0
        %1368 = vmatpush1.bf16.xpose.msra.mxu0 0
        %1369 = vmatprep.subr.bf16.mxu0 0
        %1370 = vmatpush1.bf16.xpose.msra.mxu0 0
        %1371 = vmatprep.subr.bf16.mxu0 0
        %1372 = vmatpush1.bf16.xpose.msra.mxu0 0
        %1373 = vmatprep.subr.bf16.mxu0 0
        %1374 = vmatpush1.bf16.xpose.msra.mxu0 0
        %1375 = vmatprep.subr.bf16.mxu0 0
        %1376 = vmatpush1.bf16.xpose.msra.mxu0 0
        %1377 = vmatprep.mubr.bf16.mxu0 0
        %1378 = vmatmul.mubr.bf16.gmra.mrb[0].mxu0 %v1334
        %v1379 = vpop.f32.mrb[0].mxu0
        %v1380 = vadd.f32 0.0, %v1379
        %v1381 = vpop.f32.mrb[0].mxu0
        %v1382 = vpop.f32.mrb[0].mxu0
        %v1383 = vadd.f32 0.0, %v1382
        %v1384 = vpop.f32.mrb[0].mxu0
        %1385 = vmatprep.mubr.bf16.mxu0 0
        %1386 = vmatmul.mubr.bf16.gmra.mrb[0].mxu0 %v1337
        %v1387 = vpop.f32.mrb[0].mxu0
        %v1388 = vadd.f32 0.0, %v1387
        %v1389 = vpop.f32.mrb[0].mxu0
        %v1390 = vpop.f32.mrb[0].mxu0
        %v1391 = vpop.f32.mrb[0].mxu0
        %1392 = vdwg.mxu0
        %1393 = vrot.lane.b32.xlu0 %v1317, 96
        %v1394 = vpop.permute.xlu0 %1393
        %1395 = vrot.lane.b32.xlu0 %v1319, 96
        %v1396 = vpop.permute.xlu0 %1395
        %v1398 = vsel %vm1332, %v1317, 0
        %v1401 = vsel %vm1332, %v1319, 0
        %v1404 = vsel %vm1332, %v1394, 0
        %v1407 = vsel %vm1332, %v1396, 0
        %1409 = vmatprep.subr.bf16.mxu0 0
        %1410 = vmatpush1.bf16.xpose.msra.mxu0 %v1404
        %1411 = vmatprep.subr.bf16.mxu0 0
        %1412 = vmatpush1.bf16.xpose.msra.mxu0 %v1407
        %1413 = vmatprep.subr.bf16.mxu0 0
        %1414 = vmatpush1.bf16.xpose.msra.mxu0 0
        %1415 = vmatprep.subr.bf16.mxu0 0
        %1416 = vmatpush1.bf16.xpose.msra.mxu0 0
        %1417 = vmatprep.subr.bf16.mxu0 0
        %1418 = vmatpush1.bf16.xpose.msra.mxu0 0
        %1419 = vmatprep.subr.bf16.mxu0 0
        %1420 = vmatpush1.bf16.xpose.msra.mxu0 0
        %1421 = vmatprep.subr.bf16.mxu0 0
        %1422 = vmatpush1.bf16.xpose.msra.mxu0 0
        %1423 = vmatprep.subr.bf16.mxu0 0
        %1424 = vmatpush1.bf16.xpose.msra.mxu0 0
        %1425 = vmatprep.subr.bf16.mxu0 0
        %1426 = vmatpush1.bf16.xpose.msra.mxu0 0
        %1427 = vmatprep.subr.bf16.mxu0 0
        %1428 = vmatpush1.bf16.xpose.msra.mxu0 0
        %1429 = vmatprep.subr.bf16.mxu0 0
        %1430 = vmatpush1.bf16.xpose.msra.mxu0 0
        %1431 = vmatprep.subr.bf16.mxu0 0
        %1432 = vmatpush1.bf16.xpose.msra.mxu0 0
        %1433 = vmatprep.subr.bf16.mxu0 0
        %1434 = vmatpush1.bf16.xpose.msra.mxu0 0
        %1435 = vmatprep.subr.bf16.mxu0 0
        %1436 = vmatpush1.bf16.xpose.msra.mxu0 0
        %1437 = vmatprep.subr.bf16.mxu0 0
        %1438 = vmatpush1.bf16.xpose.msra.mxu0 0
        %1439 = vmatprep.subr.bf16.mxu0 0
        %1440 = vmatpush1.bf16.xpose.msra.mxu0 0
        %1441 = vmatprep.mubr.bf16.mxu0 0
        %1442 = vmatmul.mubr.bf16.gmra.mrb[0].mxu0 %v1398
        %v1443 = vpop.f32.mrb[0].mxu0
        %v1444 = vadd.f32 0.0, %v1443
        %v1445 = vpop.f32.mrb[0].mxu0
        %v1446 = vpop.f32.mrb[0].mxu0
        %v1447 = vadd.f32 0.0, %v1446
        %v1448 = vpop.f32.mrb[0].mxu0
        %1449 = vmatprep.mubr.bf16.mxu0 0
        %1450 = vmatmul.mubr.bf16.gmra.mrb[0].mxu0 %v1401
        %v1451 = vpop.f32.mrb[0].mxu0
        %v1452 = vadd.f32 0.0, %v1451
        %v1453 = vpop.f32.mrb[0].mxu0
        %v1454 = vpop.f32.mrb[0].mxu0
        %v1455 = vpop.f32.mrb[0].mxu0
        %1456 = vdwg.mxu0
        %1457 = vrot.lane.b32.xlu0 %v1321, 96
        %v1458 = vpop.permute.xlu0 %1457
        %1459 = vrot.lane.b32.xlu0 %v1323, 96
        %v1460 = vpop.permute.xlu0 %1459
        %v1462 = vsel %vm1332, %v1321, 0
        %v1465 = vsel %vm1332, %v1323, 0
        %v1468 = vsel %vm1332, %v1458, 0
        %v1471 = vsel %vm1332, %v1460, 0
        %1473 = vmatprep.subr.bf16.mxu0 0
        %1474 = vmatpush1.bf16.xpose.msra.mxu0 %v1468
        %1475 = vmatprep.subr.bf16.mxu0 0
        %1476 = vmatpush1.bf16.xpose.msra.mxu0 %v1471
        %1477 = vmatprep.subr.bf16.mxu0 0
        %1478 = vmatpush1.bf16.xpose.msra.mxu0 0
        %1479 = vmatprep.subr.bf16.mxu0 0
        %1480 = vmatpush1.bf16.xpose.msra.mxu0 0
        %1481 = vmatprep.subr.bf16.mxu0 0
        %1482 = vmatpush1.bf16.xpose.msra.mxu0 0
        %1483 = vmatprep.subr.bf16.mxu0 0
        %1484 = vmatpush1.bf16.xpose.msra.mxu0 0
        %1485 = vmatprep.subr.bf16.mxu0 0
        %1486 = vmatpush1.bf16.xpose.msra.mxu0 0
        %1487 = vmatprep.subr.bf16.mxu0 0
        %1488 = vmatpush1.bf16.xpose.msra.mxu0 0
        %1489 = vmatprep.subr.bf16.mxu0 0
        %1490 = vmatpush1.bf16.xpose.msra.mxu0 0
        %1491 = vmatprep.subr.bf16.mxu0 0
        %1492 = vmatpush1.bf16.xpose.msra.mxu0 0
        %1493 = vmatprep.subr.bf16.mxu0 0
        %1494 = vmatpush1.bf16.xpose.msra.mxu0 0
        %1495 = vmatprep.subr.bf16.mxu0 0
        %1496 = vmatpush1.bf16.xpose.msra.mxu0 0
        %1497 = vmatprep.subr.bf16.mxu0 0
        %1498 = vmatpush1.bf16.xpose.msra.mxu0 0
        %1499 = vmatprep.subr.bf16.mxu0 0
        %1500 = vmatpush1.bf16.xpose.msra.mxu0 0
        %1501 = vmatprep.subr.bf16.mxu0 0
        %1502 = vmatpush1.bf16.xpose.msra.mxu0 0
        %1503 = vmatprep.subr.bf16.mxu0 0
        %1504 = vmatpush1.bf16.xpose.msra.mxu0 0
        %1505 = vmatprep.mubr.bf16.mxu0 0
        %1506 = vmatmul.mubr.bf16.gmra.mrb[0].mxu0 %v1462
        %v1507 = vpop.f32.mrb[0].mxu0
        %v1508 = vadd.f32 0.0, %v1507
        %v1509 = vpop.f32.mrb[0].mxu0
        %v1510 = vpop.f32.mrb[0].mxu0
        %v1511 = vadd.f32 0.0, %v1510
        %v1512 = vpop.f32.mrb[0].mxu0
        %1513 = vmatprep.mubr.bf16.mxu0 0
        %1514 = vmatmul.mubr.bf16.gmra.mrb[0].mxu0 %v1465
        %v1515 = vpop.f32.mrb[0].mxu0
        %v1516 = vadd.f32 0.0, %v1515
        %v1517 = vpop.f32.mrb[0].mxu0
        %v1518 = vpop.f32.mrb[0].mxu0
        %v1519 = vpop.f32.mrb[0].mxu0
        %1520 = vdwg.mxu0
        %1521 = vrot.lane.b32.xlu0 %v1325, 96
        %v1522 = vpop.permute.xlu0 %1521
        %1523 = vrot.lane.b32.xlu0 %v1327, 96
        %v1524 = vpop.permute.xlu0 %1523
        %v1526 = vsel %vm1332, %v1325, 0
        %v1529 = vsel %vm1332, %v1327, 0
        %v1532 = vsel %vm1332, %v1522, 0
        %v1535 = vsel %vm1332, %v1524, 0
        %1537 = vmatprep.subr.bf16.mxu0 0
        %1538 = vmatpush1.bf16.xpose.msra.mxu0 %v1532
        %1539 = vmatprep.subr.bf16.mxu0 0
        %1540 = vmatpush1.bf16.xpose.msra.mxu0 %v1535
        %1541 = vmatprep.subr.bf16.mxu0 0
        %1542 = vmatpush1.bf16.xpose.msra.mxu0 0
        %1543 = vmatprep.subr.bf16.mxu0 0
        %1544 = vmatpush1.bf16.xpose.msra.mxu0 0
        %1545 = vmatprep.subr.bf16.mxu0 0
        %1546 = vmatpush1.bf16.xpose.msra.mxu0 0
        %1547 = vmatprep.subr.bf16.mxu0 0
        %1548 = vmatpush1.bf16.xpose.msra.mxu0 0
        %1549 = vmatprep.subr.bf16.mxu0 0
        %1550 = vmatpush1.bf16.xpose.msra.mxu0 0
        %1551 = vmatprep.subr.bf16.mxu0 0
        %1552 = vmatpush1.bf16.xpose.msra.mxu0 0
        %1553 = vmatprep.subr.bf16.mxu0 0
        %1554 = vmatpush1.bf16.xpose.msra.mxu0 0
        %1555 = vmatprep.subr.bf16.mxu0 0
        %1556 = vmatpush1.bf16.xpose.msra.mxu0 0
        %1557 = vmatprep.subr.bf16.mxu0 0
        %1558 = vmatpush1.bf16.xpose.msra.mxu0 0
        %1559 = vmatprep.subr.bf16.mxu0 0
        %1560 = vmatpush1.bf16.xpose.msra.mxu0 0
        %1561 = vmatprep.subr.bf16.mxu0 0
        %1562 = vmatpush1.bf16.xpose.msra.mxu0 0
        %1563 = vmatprep.subr.bf16.mxu0 0
        %1564 = vmatpush1.bf16.xpose.msra.mxu0 0
        %1565 = vmatprep.subr.bf16.mxu0 0
        %1566 = vmatpush1.bf16.xpose.msra.mxu0 0
        %1567 = vmatprep.subr.bf16.mxu0 0
        %1568 = vmatpush1.bf16.xpose.msra.mxu0 0
        %1569 = vmatprep.mubr.bf16.mxu0 0
        %1570 = vmatmul.mubr.bf16.gmra.mrb[0].mxu0 %v1526
        %v1571 = vpop.f32.mrb[0].mxu0
        %v1572 = vadd.f32 0.0, %v1571
        %v1573 = vpop.f32.mrb[0].mxu0
        %v1574 = vpop.f32.mrb[0].mxu0
        %v1575 = vadd.f32 0.0, %v1574
        %v1576 = vpop.f32.mrb[0].mxu0
        %1577 = vmatprep.mubr.bf16.mxu0 0
        %1578 = vmatmul.mubr.bf16.gmra.mrb[0].mxu0 %v1529
        %v1579 = vpop.f32.mrb[0].mxu0
        %v1580 = vadd.f32 0.0, %v1579
        %v1581 = vpop.f32.mrb[0].mxu0
        %v1582 = vpop.f32.mrb[0].mxu0
        %v1583 = vpop.f32.mrb[0].mxu0
        %1584 = vdwg.mxu0
        %vm1585 = vcmask 138240
        %v1586 = vsel %vm1585, %v1380, -inf
        %1587 = vmax.xlane.f32.xlu0 %v1586
        %v1588 = vpop.xlane.xlu0 %1587
        %v1589 = vsel %vm1585, %v1383, -inf
        %1590 = vmax.xlane.f32.xlu0 %v1589
        %v1591 = vpop.xlane.xlu0 %1590
        %vm1592 = vcmask 131072
        %v1593 = vsel %vm1592, %v1388, -inf
        %1594 = vmax.xlane.f32.xlu0 %v1593
        %v1595 = vpop.xlane.xlu0 %1594
        %v1596 = vsel %vm1585, %v1444, -inf
        %1597 = vmax.xlane.f32.xlu0 %v1596
        %v1598 = vpop.xlane.xlu0 %1597
        %v1599 = vsel %vm1585, %v1447, -inf
        %1600 = vmax.xlane.f32.xlu0 %v1599
        %v1601 = vpop.xlane.xlu0 %1600
        %v1602 = vsel %vm1592, %v1452, -inf
        %1603 = vmax.xlane.f32.xlu0 %v1602
        %v1604 = vpop.xlane.xlu0 %1603
        %v1605 = vsel %vm1585, %v1508, -inf
        %1606 = vmax.xlane.f32.xlu0 %v1605
        %v1607 = vpop.xlane.xlu0 %1606
        %v1608 = vsel %vm1585, %v1511, -inf
        %1609 = vmax.xlane.f32.xlu0 %v1608
        %v1610 = vpop.xlane.xlu0 %1609
        %v1611 = vsel %vm1592, %v1516, -inf
        %1612 = vmax.xlane.f32.xlu0 %v1611
        %v1613 = vpop.xlane.xlu0 %1612
        %v1614 = vsel %vm1585, %v1572, -inf
        %1615 = vmax.xlane.f32.xlu0 %v1614
        %v1616 = vpop.xlane.xlu0 %1615
        %v1617 = vsel %vm1585, %v1575, -inf
        %1618 = vmax.xlane.f32.xlu0 %v1617
        %v1619 = vpop.xlane.xlu0 %1618
        %v1620 = vsel %vm1592, %v1580, -inf
        %1621 = vmax.xlane.f32.xlu0 %v1620
        %v1622 = vpop.xlane.xlu0 %1621
        %v1623 = vsub.f32 %v1380, %v1588
        %v1624 = vsub.f32 %v1383, %v1591
        %v1625 = vsub.f32 %v1388, %v1595
        %v1626 = vsub.f32 %v1444, %v1598
        %v1627 = vsub.f32 %v1447, %v1601
        %v1628 = vsub.f32 %v1452, %v1604
        %v1629 = vsub.f32 %v1508, %v1607
        %v1630 = vsub.f32 %v1511, %v1610
        %v1631 = vsub.f32 %v1516, %v1613
        %v1632 = vsub.f32 %v1572, %v1616
        %v1633 = vsub.f32 %v1575, %v1619
        %v1634 = vsub.f32 %v1580, %v1622
        %v1635 = vmul.f32 %v1623, 1.442695
        %v1636 = vpow.pop %v1635
        %v1637 = vmul.f32 %v1624, 1.442695
        %v1638 = vpow.pop %v1637
        %v1639 = vmul.f32 %v1625, 1.442695
        %v1640 = vpow.pop %v1639
        %v1641 = vmul.f32 %v1626, 1.442695
        %v1642 = vpow.pop %v1641
        %v1643 = vmul.f32 %v1627, 1.442695
        %v1644 = vpow.pop %v1643
        %v1645 = vmul.f32 %v1628, 1.442695
        %v1646 = vpow.pop %v1645
        %v1647 = vmul.f32 %v1629, 1.442695
        %v1648 = vpow.pop %v1647
        %v1649 = vmul.f32 %v1630, 1.442695
        %v1650 = vpow.pop %v1649
        %v1651 = vmul.f32 %v1631, 1.442695
        %v1652 = vpow.pop %v1651
        %v1653 = vmul.f32 %v1632, 1.442695
        %v1654 = vpow.pop %v1653
        %v1655 = vmul.f32 %v1633, 1.442695
        %v1656 = vpow.pop %v1655
        %v1657 = vmul.f32 %v1634, 1.442695
        %v1658 = vpow.pop %v1657
        %v1659 = vsel %vm1585, %v1636, 0.0
        %1660 = vadd.xlane.f32.xlu0 %v1659
        %v1661 = vpop.xlane.xlu0 %1660
        %v1662 = vsel %vm1585, %v1638, 0.0
        %1663 = vadd.xlane.f32.xlu0 %v1662
        %v1664 = vpop.xlane.xlu0 %1663
        %v1665 = vsel %vm1592, %v1640, 0.0
        %1666 = vadd.xlane.f32.xlu0 %v1665
        %v1667 = vpop.xlane.xlu0 %1666
        %v1668 = vsel %vm1585, %v1642, 0.0
        %1669 = vadd.xlane.f32.xlu0 %v1668
        %v1670 = vpop.xlane.xlu0 %1669
        %v1671 = vsel %vm1585, %v1644, 0.0
        %1672 = vadd.xlane.f32.xlu0 %v1671
        %v1673 = vpop.xlane.xlu0 %1672
        %v1674 = vsel %vm1592, %v1646, 0.0
        %1675 = vadd.xlane.f32.xlu0 %v1674
        %v1676 = vpop.xlane.xlu0 %1675
        %v1677 = vsel %vm1585, %v1648, 0.0
        %1678 = vadd.xlane.f32.xlu0 %v1677
        %v1679 = vpop.xlane.xlu0 %1678
        %v1680 = vsel %vm1585, %v1650, 0.0
        %1681 = vadd.xlane.f32.xlu0 %v1680
        %v1682 = vpop.xlane.xlu0 %1681
        %v1683 = vsel %vm1592, %v1652, 0.0
        %1684 = vadd.xlane.f32.xlu0 %v1683
        %v1685 = vpop.xlane.xlu0 %1684
        %v1686 = vsel %vm1585, %v1654, 0.0
        %1687 = vadd.xlane.f32.xlu0 %v1686
        %v1688 = vpop.xlane.xlu0 %1687
        %v1689 = vsel %vm1585, %v1656, 0.0
        %1690 = vadd.xlane.f32.xlu0 %v1689
        %v1691 = vpop.xlane.xlu0 %1690
        %v1692 = vsel %vm1592, %v1658, 0.0
        %1693 = vadd.xlane.f32.xlu0 %v1692
        %v1694 = vpop.xlane.xlu0 %1693
        %v1695 = vrcp.pop %v1661
        %v1696 = vrcp.pop %v1664
        %v1697 = vrcp.pop %v1667
        %v1698 = vrcp.pop %v1670
        %v1699 = vrcp.pop %v1673
        %v1700 = vrcp.pop %v1676
        %v1701 = vrcp.pop %v1679
        %v1702 = vrcp.pop %v1682
        %v1703 = vrcp.pop %v1685
        %v1704 = vrcp.pop %v1688
        %v1705 = vrcp.pop %v1691
        %v1706 = vrcp.pop %v1694
        %v1707 = vmul.f32 %v1636, %v1695
        %v1708 = vmul.f32 %v1638, %v1696
        %v1709 = vmul.f32 %v1640, %v1697
        %v1710 = vmul.f32 %v1642, %v1698
        %v1711 = vmul.f32 %v1644, %v1699
        %v1712 = vmul.f32 %v1646, %v1700
        %v1713 = vmul.f32 %v1648, %v1701
        %v1714 = vmul.f32 %v1650, %v1702
        %v1715 = vmul.f32 %v1652, %v1703
        %v1716 = vmul.f32 %v1654, %v1704
        %v1717 = vmul.f32 %v1656, %v1705
        %v1718 = vmul.f32 %v1658, %v1706
        %v1719 = vpack.c.bf16 %v1708, %v1707
        %v1720 = vpack.c.bf16 %v1709, %v1709
        %v1721 = vpack.c.bf16 %v1711, %v1710
        %v1722 = vpack.c.bf16 %v1712, %v1712
        %v1723 = vpack.c.bf16 %v1714, %v1713
        %v1724 = vpack.c.bf16 %v1715, %v1715
        %v1725 = vpack.c.bf16 %v1717, %v1716
        %v1726 = vpack.c.bf16 %v1718, %v1718
        %1727 = vrot.lane.b32.xlu0 %v1312, 64
        %v1728 = vpop.permute.xlu0 %1727
        %1729 = vrot.lane.b32.xlu0 %v1313, 64
        %v1730 = vpop.permute.xlu0 %1729
        %v1733 = vsel %vm1585, %v1719, 0
        %v1736 = vsel %vm1585, %v1720, 0
        %vm1738 = vcmask 1040384
        %v1739 = vsel 0, 4294967295, 65535
        %v1740 = vsel %vm1738, %v1739, 0
        %v1742 = vand.u32 %v1730, %v1740
        %1744 = vmatprep.subr.bf16.mxu0 0
        %1745 = vmatpush1.bf16.msra.mxu0 %v1728
        %1746 = vmatprep.subr.bf16.mxu0 0
        %1747 = vmatpush1.bf16.msra.mxu0 %v1742
        %1748 = vmatprep.subr.bf16.mxu0 0
        %1749 = vmatpush1.bf16.msra.mxu0 0
        %1750 = vmatprep.subr.bf16.mxu0 0
        %1751 = vmatpush1.bf16.msra.mxu0 0
        %1752 = vmatprep.subr.bf16.mxu0 0
        %1753 = vmatpush1.bf16.msra.mxu0 0
        %1754 = vmatprep.subr.bf16.mxu0 0
        %1755 = vmatpush1.bf16.msra.mxu0 0
        %1756 = vmatprep.subr.bf16.mxu0 0
        %1757 = vmatpush1.bf16.msra.mxu0 0
        %1758 = vmatprep.subr.bf16.mxu0 0
        %1759 = vmatpush1.bf16.msra.mxu0 0
        %1760 = vmatprep.subr.bf16.mxu0 0
        %1761 = vmatpush1.bf16.msra.mxu0 0
        %1762 = vmatprep.subr.bf16.mxu0 0
        %1763 = vmatpush1.bf16.msra.mxu0 0
        %1764 = vmatprep.subr.bf16.mxu0 0
        %1765 = vmatpush1.bf16.msra.mxu0 0
        %1766 = vmatprep.subr.bf16.mxu0 0
        %1767 = vmatpush1.bf16.msra.mxu0 0
        %1768 = vmatprep.subr.bf16.mxu0 0
        %1769 = vmatpush1.bf16.msra.mxu0 0
        %1770 = vmatprep.subr.bf16.mxu0 0
        %1771 = vmatpush1.bf16.msra.mxu0 0
        %1772 = vmatprep.subr.bf16.mxu0 0
        %1773 = vmatpush1.bf16.msra.mxu0 0
        %1774 = vmatprep.subr.bf16.mxu0 0
        %1775 = vmatpush1.bf16.msra.mxu0 0
        %1776 = vmatprep.mubr.bf16.mxu0 0
        %1777 = vmatmul.mubr.bf16.gmra.mrb[0].mxu0 %v1733
        %v1778 = vpop.f32.mrb[0].mxu0
        %v1779 = vadd.f32 0.0, %v1778
        %v1780 = vpop.f32.mrb[0].mxu0
        %v1781 = vpop.f32.mrb[0].mxu0
        %v1782 = vadd.f32 0.0, %v1781
        %v1783 = vpop.f32.mrb[0].mxu0
        %1784 = vmatprep.mubr.bf16.mxu0 0
        %1785 = vmatmul.mubr.bf16.gmra.mrb[0].mxu0 %v1736
        %v1786 = vpop.f32.mrb[0].mxu0
        %v1787 = vadd.f32 0.0, %v1786
        %v1788 = vpop.f32.mrb[0].mxu0
        %v1789 = vpop.f32.mrb[0].mxu0
        %v1790 = vpop.f32.mrb[0].mxu0
        %1791 = vdwg.mxu0
        %1792 = vrot.lane.b32.xlu0 %v1317, 64
        %v1793 = vpop.permute.xlu0 %1792
        %1794 = vrot.lane.b32.xlu0 %v1319, 64
        %v1795 = vpop.permute.xlu0 %1794
        %v1798 = vsel %vm1585, %v1721, 0
        %v1801 = vsel %vm1585, %v1722, 0
        %v1804 = vand.u32 %v1795, %v1740
        %1806 = vmatprep.subr.bf16.mxu0 0
        %1807 = vmatpush1.bf16.msra.mxu0 %v1793
        %1808 = vmatprep.subr.bf16.mxu0 0
        %1809 = vmatpush1.bf16.msra.mxu0 %v1804
        %1810 = vmatprep.subr.bf16.mxu0 0
        %1811 = vmatpush1.bf16.msra.mxu0 0
        %1812 = vmatprep.subr.bf16.mxu0 0
        %1813 = vmatpush1.bf16.msra.mxu0 0
        %1814 = vmatprep.subr.bf16.mxu0 0
        %1815 = vmatpush1.bf16.msra.mxu0 0
        %1816 = vmatprep.subr.bf16.mxu0 0
        %1817 = vmatpush1.bf16.msra.mxu0 0
        %1818 = vmatprep.subr.bf16.mxu0 0
        %1819 = vmatpush1.bf16.msra.mxu0 0
        %1820 = vmatprep.subr.bf16.mxu0 0
        %1821 = vmatpush1.bf16.msra.mxu0 0
        %1822 = vmatprep.subr.bf16.mxu0 0
        %1823 = vmatpush1.bf16.msra.mxu0 0
        %1824 = vmatprep.subr.bf16.mxu0 0
        %1825 = vmatpush1.bf16.msra.mxu0 0
        %1826 = vmatprep.subr.bf16.mxu0 0
        %1827 = vmatpush1.bf16.msra.mxu0 0
        %1828 = vmatprep.subr.bf16.mxu0 0
        %1829 = vmatpush1.bf16.msra.mxu0 0
        %1830 = vmatprep.subr.bf16.mxu0 0
        %1831 = vmatpush1.bf16.msra.mxu0 0
        %1832 = vmatprep.subr.bf16.mxu0 0
        %1833 = vmatpush1.bf16.msra.mxu0 0
        %1834 = vmatprep.subr.bf16.mxu0 0
        %1835 = vmatpush1.bf16.msra.mxu0 0
        %1836 = vmatprep.subr.bf16.mxu0 0
        %1837 = vmatpush1.bf16.msra.mxu0 0
        %1838 = vmatprep.mubr.bf16.mxu0 0
        %1839 = vmatmul.mubr.bf16.gmra.mrb[0].mxu0 %v1798
        %v1840 = vpop.f32.mrb[0].mxu0
        %v1841 = vadd.f32 0.0, %v1840
        %v1842 = vpop.f32.mrb[0].mxu0
        %v1843 = vpop.f32.mrb[0].mxu0
        %v1844 = vadd.f32 0.0, %v1843
        %v1845 = vpop.f32.mrb[0].mxu0
        %1846 = vmatprep.mubr.bf16.mxu0 0
        %1847 = vmatmul.mubr.bf16.gmra.mrb[0].mxu0 %v1801
        %v1848 = vpop.f32.mrb[0].mxu0
        %v1849 = vadd.f32 0.0, %v1848
        %v1850 = vpop.f32.mrb[0].mxu0
        %v1851 = vpop.f32.mrb[0].mxu0
        %v1852 = vpop.f32.mrb[0].mxu0
        %1853 = vdwg.mxu0
        %1854 = vrot.lane.b32.xlu0 %v1321, 64
        %v1855 = vpop.permute.xlu0 %1854
        %1856 = vrot.lane.b32.xlu0 %v1323, 64
        %v1857 = vpop.permute.xlu0 %1856
        %v1860 = vsel %vm1585, %v1723, 0
        %v1863 = vsel %vm1585, %v1724, 0
        %v1866 = vand.u32 %v1857, %v1740
        %1868 = vmatprep.subr.bf16.mxu0 0
        %1869 = vmatpush1.bf16.msra.mxu0 %v1855
        %1870 = vmatprep.subr.bf16.mxu0 0
        %1871 = vmatpush1.bf16.msra.mxu0 %v1866
        %1872 = vmatprep.subr.bf16.mxu0 0
        %1873 = vmatpush1.bf16.msra.mxu0 0
        %1874 = vmatprep.subr.bf16.mxu0 0
        %1875 = vmatpush1.bf16.msra.mxu0 0
        %1876 = vmatprep.subr.bf16.mxu0 0
        %1877 = vmatpush1.bf16.msra.mxu0 0
        %1878 = vmatprep.subr.bf16.mxu0 0
        %1879 = vmatpush1.bf16.msra.mxu0 0
        %1880 = vmatprep.subr.bf16.mxu0 0
        %1881 = vmatpush1.bf16.msra.mxu0 0
        %1882 = vmatprep.subr.bf16.mxu0 0
        %1883 = vmatpush1.bf16.msra.mxu0 0
        %1884 = vmatprep.subr.bf16.mxu0 0
        %1885 = vmatpush1.bf16.msra.mxu0 0
        %1886 = vmatprep.subr.bf16.mxu0 0
        %1887 = vmatpush1.bf16.msra.mxu0 0
        %1888 = vmatprep.subr.bf16.mxu0 0
        %1889 = vmatpush1.bf16.msra.mxu0 0
        %1890 = vmatprep.subr.bf16.mxu0 0
        %1891 = vmatpush1.bf16.msra.mxu0 0
        %1892 = vmatprep.subr.bf16.mxu0 0
        %1893 = vmatpush1.bf16.msra.mxu0 0
        %1894 = vmatprep.subr.bf16.mxu0 0
        %1895 = vmatpush1.bf16.msra.mxu0 0
        %1896 = vmatprep.subr.bf16.mxu0 0
        %1897 = vmatpush1.bf16.msra.mxu0 0
        %1898 = vmatprep.subr.bf16.mxu0 0
        %1899 = vmatpush1.bf16.msra.mxu0 0
        %1900 = vmatprep.mubr.bf16.mxu0 0
        %1901 = vmatmul.mubr.bf16.gmra.mrb[0].mxu0 %v1860
        %v1902 = vpop.f32.mrb[0].mxu0
        %v1903 = vadd.f32 0.0, %v1902
        %v1904 = vpop.f32.mrb[0].mxu0
        %v1905 = vpop.f32.mrb[0].mxu0
        %v1906 = vadd.f32 0.0, %v1905
        %v1907 = vpop.f32.mrb[0].mxu0
        %1908 = vmatprep.mubr.bf16.mxu0 0
        %1909 = vmatmul.mubr.bf16.gmra.mrb[0].mxu0 %v1863
        %v1910 = vpop.f32.mrb[0].mxu0
        %v1911 = vadd.f32 0.0, %v1910
        %v1912 = vpop.f32.mrb[0].mxu0
        %v1913 = vpop.f32.mrb[0].mxu0
        %v1914 = vpop.f32.mrb[0].mxu0
        %1915 = vdwg.mxu0
        %1916 = vrot.lane.b32.xlu0 %v1325, 64
        %v1917 = vpop.permute.xlu0 %1916
        %1918 = vrot.lane.b32.xlu0 %v1327, 64
        %v1919 = vpop.permute.xlu0 %1918
        %v1922 = vsel %vm1585, %v1725, 0
        %v1925 = vsel %vm1585, %v1726, 0
        %v1928 = vand.u32 %v1919, %v1740
        %1930 = vmatprep.subr.bf16.mxu0 0
        %1931 = vmatpush1.bf16.msra.mxu0 %v1917
        %1932 = vmatprep.subr.bf16.mxu0 0
        %1933 = vmatpush1.bf16.msra.mxu0 %v1928
        %1934 = vmatprep.subr.bf16.mxu0 0
        %1935 = vmatpush1.bf16.msra.mxu0 0
        %1936 = vmatprep.subr.bf16.mxu0 0
        %1937 = vmatpush1.bf16.msra.mxu0 0
        %1938 = vmatprep.subr.bf16.mxu0 0
        %1939 = vmatpush1.bf16.msra.mxu0 0
        %1940 = vmatprep.subr.bf16.mxu0 0
        %1941 = vmatpush1.bf16.msra.mxu0 0
        %1942 = vmatprep.subr.bf16.mxu0 0
        %1943 = vmatpush1.bf16.msra.mxu0 0
        %1944 = vmatprep.subr.bf16.mxu0 0
        %1945 = vmatpush1.bf16.msra.mxu0 0
        %1946 = vmatprep.subr.bf16.mxu0 0
        %1947 = vmatpush1.bf16.msra.mxu0 0
        %1948 = vmatprep.subr.bf16.mxu0 0
        %1949 = vmatpush1.bf16.msra.mxu0 0
        %1950 = vmatprep.subr.bf16.mxu0 0
        %1951 = vmatpush1.bf16.msra.mxu0 0
        %1952 = vmatprep.subr.bf16.mxu0 0
        %1953 = vmatpush1.bf16.msra.mxu0 0
        %1954 = vmatprep.subr.bf16.mxu0 0
        %1955 = vmatpush1.bf16.msra.mxu0 0
        %1956 = vmatprep.subr.bf16.mxu0 0
        %1957 = vmatpush1.bf16.msra.mxu0 0
        %1958 = vmatprep.subr.bf16.mxu0 0
        %1959 = vmatpush1.bf16.msra.mxu0 0
        %1960 = vmatprep.subr.bf16.mxu0 0
        %1961 = vmatpush1.bf16.msra.mxu0 0
        %1962 = vmatprep.mubr.bf16.mxu0 0
        %1963 = vmatmul.mubr.bf16.gmra.mrb[0].mxu0 %v1922
        %v1964 = vpop.f32.mrb[0].mxu0
        %v1965 = vadd.f32 0.0, %v1964
        %v1966 = vpop.f32.mrb[0].mxu0
        %v1967 = vpop.f32.mrb[0].mxu0
        %v1968 = vadd.f32 0.0, %v1967
        %v1969 = vpop.f32.mrb[0].mxu0
        %1970 = vmatprep.mubr.bf16.mxu0 0
        %1971 = vmatmul.mubr.bf16.gmra.mrb[0].mxu0 %v1925
        %v1972 = vpop.f32.mrb[0].mxu0
        %v1973 = vadd.f32 0.0, %v1972
        %v1974 = vpop.f32.mrb[0].mxu0
        %v1975 = vpop.f32.mrb[0].mxu0
        %v1976 = vpop.f32.mrb[0].mxu0
        %1977 = vdwg.mxu0
        %1981 = vrot.lane.b32.xlu0 %v1841, 8
        %v1982 = vpop.permute.xlu0 %1981
        %1983 = vrot.lane.b32.xlu0 %v1844, 8
        %v1984 = vpop.permute.xlu0 %1983
        %1985 = vrot.lane.b32.xlu0 %v1849, 8
        %v1986 = vpop.permute.xlu0 %1985
        %1993 = vrot.lane.b32.xlu0 %v1903, 16
        %v1994 = vpop.permute.xlu0 %1993
        %1995 = vrot.lane.b32.xlu0 %v1906, 16
        %v1996 = vpop.permute.xlu0 %1995
        %1997 = vrot.lane.b32.xlu0 %v1911, 16
        %v1998 = vpop.permute.xlu0 %1997
        %2005 = vrot.lane.b32.xlu0 %v1965, 24
        %v2006 = vpop.permute.xlu0 %2005
        %2007 = vrot.lane.b32.xlu0 %v1968, 24
        %v2008 = vpop.permute.xlu0 %2007
        %2009 = vrot.lane.b32.xlu0 %v1973, 24
        %v2010 = vpop.permute.xlu0 %2009
        %v2014 = vsel %vm1332, %v1779, %v1982
        %v2015 = vsel %vm1332, %v1782, %v1984
        %v2016 = vsel %vm1332, %v1787, %v1986
        %vm2017 = vcmask 130048
        %v2018 = vsel %vm2017, %v2014, %v1994
        %v2019 = vsel %vm2017, %v2015, %v1996
        %v2020 = vsel %vm2017, %v2016, %v1998
        %vm2021 = vcmask 195584
        %v2022 = vsel %vm2021, %v2018, %v2006
        %v2023 = vsel %vm2021, %v2019, %v2008
        %v2024 = vsel %vm2021, %v2020, %v2010
        %v2025 = vpack.c.bf16 %v2023, %v2022
        %v2026 = vpack.c.bf16 %v2024, %v2024
        %v2027 = vld [vmem:[%s895] sm:$0xf]
        %v2028 = vld [vmem:[%s895 + $0x4] sm:$0xf]
        %v2029 = vld [vmem:[%s895 + $0x8] sm:$0xf]
        %v2030 = vld [vmem:[%s895 + $0xc] sm:$0xf]
        %v2031 = vld [vmem:[%s903] sm:$0x1]
        %v2033 = vlaneseq
        %v2034 = vshrl.u32 %v2033, 7
        %v2035 = vsub.s32 0, %v2034
        %v2036 = vrot.slane %v2031, %v2035
        %v2042 = vunpack.c.l.b16 %v2027
        %v2043 = vunpack.c.l.b16 %v2028
        %v2044 = vunpack.c.l.b16 %v2029
        %v2045 = vunpack.c.l.b16 %v2030
        %v2046 = vpack.c.b16 %v2043, %v2042
        %v2047 = vpack.c.b16 %v2045, %v2044
        %v2051 = vsel %vm1173, %v2025, 0
        %v2054 = vsel %vm1173, %v2026, 0
        %2056 = vmatprep.subr.bf16.mxu0 0
        %2057 = vmatpush1.bf16.msra.mxu0 %v2046
        %2058 = vmatprep.subr.bf16.mxu0 0
        %2059 = vmatpush1.bf16.msra.mxu0 %v2047
        %2060 = vmatprep.subr.bf16.mxu0 0
        %2061 = vmatpush1.bf16.msra.mxu0 0
        %2062 = vmatprep.subr.bf16.mxu0 0
        %2063 = vmatpush1.bf16.msra.mxu0 0
        %2064 = vmatprep.subr.bf16.mxu0 0
        %2065 = vmatpush1.bf16.msra.mxu0 0
        %2066 = vmatprep.subr.bf16.mxu0 0
        %2067 = vmatpush1.bf16.msra.mxu0 0
        %2068 = vmatprep.subr.bf16.mxu0 0
        %2069 = vmatpush1.bf16.msra.mxu0 0
        %2070 = vmatprep.subr.bf16.mxu0 0
        %2071 = vmatpush1.bf16.msra.mxu0 0
        %2072 = vmatprep.subr.bf16.mxu0 0
        %2073 = vmatpush1.bf16.msra.mxu0 0
        %2074 = vmatprep.subr.bf16.mxu0 0
        %2075 = vmatpush1.bf16.msra.mxu0 0
        %2076 = vmatprep.subr.bf16.mxu0 0
        %2077 = vmatpush1.bf16.msra.mxu0 0
        %2078 = vmatprep.subr.bf16.mxu0 0
        %2079 = vmatpush1.bf16.msra.mxu0 0
        %2080 = vmatprep.subr.bf16.mxu0 0
        %2081 = vmatpush1.bf16.msra.mxu0 0
        %2082 = vmatprep.subr.bf16.mxu0 0
        %2083 = vmatpush1.bf16.msra.mxu0 0
        %2084 = vmatprep.subr.bf16.mxu0 0
        %2085 = vmatpush1.bf16.msra.mxu0 0
        %2086 = vmatprep.subr.bf16.mxu0 0
        %2087 = vmatpush1.bf16.msra.mxu0 0
        %2088 = vmatprep.mubr.bf16.mxu0 0
        %2089 = vmatmul.mubr.bf16.gmra.mrb[0].mxu0 %v2051
        %v2090 = vpop.f32.mrb[0].mxu0
        %v2091 = vadd.f32 %v2036, %v2090
        %v2092 = vpop.f32.mrb[0].mxu0
        %v2093 = vpop.f32.mrb[0].mxu0
        %v2094 = vadd.f32 %v2036, %v2093
        %v2095 = vpop.f32.mrb[0].mxu0
        %2096 = vmatprep.mubr.bf16.mxu0 0
        %2097 = vmatmul.mubr.bf16.gmra.mrb[0].mxu0 %v2054
        %v2098 = vpop.f32.mrb[0].mxu0
        %v2099 = vadd.f32 %v2036, %v2098
        %v2100 = vpop.f32.mrb[0].mxu0
        %v2101 = vpop.f32.mrb[0].mxu0
        %v2102 = vpop.f32.mrb[0].mxu0
        %2103 = vdwg.mxu0
        %v2104 = vadd.f32 %v1168, %v2091
        %v2105 = vadd.f32 %v1169, %v2094
        %v2106 = vadd.f32 %v1170, %v2099
        %v2107 = vld [vmem:[%s911] sm:$0x1]
        %v2108 = vld [vmem:[%s919] sm:$0x1]
        %v2109 = vsel %vm1173, %v2104, 0.0
        %2110 = vadd.xlane.f32.xlu0 %v2109
        %v2111 = vpop.xlane.xlu0 %2110
        %v2112 = vsel %vm1173, %v2105, 0.0
        %2113 = vadd.xlane.f32.xlu0 %v2112
        %v2114 = vpop.xlane.xlu0 %2113
        %v2115 = vsel %vm1180, %v2106, 0.0
        %2116 = vadd.xlane.f32.xlu0 %v2115
        %v2117 = vpop.xlane.xlu0 %2116
        %v2118 = vmul.f32 %v2111, %v1184
        %v2119 = vmul.f32 %v2114, %v1184
        %v2120 = vmul.f32 %v2117, %v1184
        %v2121 = vsub.f32 %v2104, %v2118
        %v2122 = vsub.f32 %v2105, %v2119
        %v2123 = vsub.f32 %v2106, %v2120
        %v2124 = vmul.f32 %v2121, %v2121
        %v2125 = vmul.f32 %v2122, %v2122
        %v2126 = vmul.f32 %v2123, %v2123
        %v2127 = vsel %vm1173, %v2124, 0.0
        %2128 = vadd.xlane.f32.xlu0 %v2127
        %v2129 = vpop.xlane.xlu0 %2128
        %v2130 = vsel %vm1173, %v2125, 0.0
        %2131 = vadd.xlane.f32.xlu0 %v2130
        %v2132 = vpop.xlane.xlu0 %2131
        %v2133 = vsel %vm1180, %v2126, 0.0
        %2134 = vadd.xlane.f32.xlu0 %v2133
        %v2135 = vpop.xlane.xlu0 %2134
        %v2136 = vmul.f32 %v2129, %v1184
        %v2137 = vmul.f32 %v2132, %v1184
        %v2138 = vmul.f32 %v2135, %v1184
        %v2139 = vadd.f32 %v2136, 1e-05
        %v2140 = vadd.f32 %v2137, 1e-05
        %v2141 = vadd.f32 %v2138, 1e-05
        %v2142 = vrsqrt.pop %v2139
        %v2143 = vrsqrt.pop %v2140
        %v2144 = vrsqrt.pop %v2141
        %v2145 = vmul.f32 %v2121, %v2142
        %v2146 = vmul.f32 %v2122, %v2143
        %v2147 = vmul.f32 %v2123, %v2144
        %v2149 = vlaneseq
        %v2150 = vshrl.u32 %v2149, 7
        %v2151 = vsub.s32 0, %v2150
        %v2152 = vrot.slane %v2107, %v2151
        %v2154 = vmul.f32 %v2145, %v2152
        %v2155 = vmul.f32 %v2146, %v2152
        %v2156 = vmul.f32 %v2147, %v2152
        %v2158 = vlaneseq
        %v2159 = vshrl.u32 %v2158, 7
        %v2160 = vsub.s32 0, %v2159
        %v2161 = vrot.slane %v2108, %v2160
        %v2163 = vadd.f32 %v2154, %v2161
        %v2164 = vadd.f32 %v2155, %v2161
        %v2165 = vadd.f32 %v2156, %v2161
        %v2166 = vpack.c.bf16 %v2164, %v2163
        %v2167 = vpack.c.bf16 %v2165, %v2165
        %v2168 = vld [vmem:[%s928] sm:$0xf]
        %v2169 = vld [vmem:[%s928 + $0x4] sm:$0xf]
        %v2170 = vld [vmem:[%s928 + $0x8] sm:$0xf]
        %v2171 = vld [vmem:[%s928 + $0xc] sm:$0xf]
        %v2172 = vld [vmem:[%s936] sm:$0x1]
        %v2174 = vlaneseq
        %v2175 = vshrl.u32 %v2174, 7
        %v2176 = vsub.s32 0, %v2175
        %v2177 = vrot.slane %v2172, %v2176
        %v2183 = vunpack.c.l.b16 %v2168
        %v2184 = vunpack.c.l.b16 %v2169
        %v2185 = vunpack.c.l.b16 %v2170
        %v2186 = vunpack.c.l.b16 %v2171
        %v2187 = vpack.c.b16 %v2184, %v2183
        %v2188 = vpack.c.b16 %v2186, %v2185
        %v2192 = vsel %vm1173, %v2166, 0
        %v2195 = vsel %vm1173, %v2167, 0
        %2197 = vmatprep.subr.bf16.mxu0 0
        %2198 = vmatpush1.bf16.msra.mxu0 %v2187
        %2199 = vmatprep.subr.bf16.mxu0 0
        %2200 = vmatpush1.bf16.msra.mxu0 %v2188
        %2201 = vmatprep.subr.bf16.mxu0 0
        %2202 = vmatpush1.bf16.msra.mxu0 0
        %2203 = vmatprep.subr.bf16.mxu0 0
        %2204 = vmatpush1.bf16.msra.mxu0 0
        %2205 = vmatprep.subr.bf16.mxu0 0
        %2206 = vmatpush1.bf16.msra.mxu0 0
        %2207 = vmatprep.subr.bf16.mxu0 0
        %2208 = vmatpush1.bf16.msra.mxu0 0
        %2209 = vmatprep.subr.bf16.mxu0 0
        %2210 = vmatpush1.bf16.msra.mxu0 0
        %2211 = vmatprep.subr.bf16.mxu0 0
        %2212 = vmatpush1.bf16.msra.mxu0 0
        %2213 = vmatprep.subr.bf16.mxu0 0
        %2214 = vmatpush1.bf16.msra.mxu0 0
        %2215 = vmatprep.subr.bf16.mxu0 0
        %2216 = vmatpush1.bf16.msra.mxu0 0
        %2217 = vmatprep.subr.bf16.mxu0 0
        %2218 = vmatpush1.bf16.msra.mxu0 0
        %2219 = vmatprep.subr.bf16.mxu0 0
        %2220 = vmatpush1.bf16.msra.mxu0 0
        %2221 = vmatprep.subr.bf16.mxu0 0
        %2222 = vmatpush1.bf16.msra.mxu0 0
        %2223 = vmatprep.subr.bf16.mxu0 0
        %2224 = vmatpush1.bf16.msra.mxu0 0
        %2225 = vmatprep.subr.bf16.mxu0 0
        %2226 = vmatpush1.bf16.msra.mxu0 0
        %2227 = vmatprep.subr.bf16.mxu0 0
        %2228 = vmatpush1.bf16.msra.mxu0 0
        %2229 = vmatprep.mubr.bf16.mxu0 0
        %2230 = vmatmul.mubr.bf16.gmra.mrb[0].mxu0 %v2192
        %v2231 = vpop.f32.mrb[0].mxu0
        %v2232 = vadd.f32 %v2177, %v2231
        %v2233 = vpop.f32.mrb[0].mxu0
        %v2234 = vpop.f32.mrb[0].mxu0
        %v2235 = vadd.f32 %v2177, %v2234
        %v2236 = vpop.f32.mrb[0].mxu0
        %2237 = vmatprep.mubr.bf16.mxu0 0
        %2238 = vmatmul.mubr.bf16.gmra.mrb[0].mxu0 %v2195
        %v2239 = vpop.f32.mrb[0].mxu0
        %v2240 = vadd.f32 %v2177, %v2239
        %v2241 = vpop.f32.mrb[0].mxu0
        %v2242 = vpop.f32.mrb[0].mxu0
        %v2243 = vpop.f32.mrb[0].mxu0
        %2244 = vdwg.mxu0
        %v2245 = vmul.f32 %v2232, 0.5
        %v2246 = vmul.f32 %v2235, 0.5
        %v2247 = vmul.f32 %v2240, 0.5
        %v2248 = vmul.f32 %v2232, 0.044715
        %v2249 = vmul.f32 %v2235, 0.044715
        %v2250 = vmul.f32 %v2240, 0.044715
        %v2251 = vmul.f32 %v2248, %v2232
        %v2252 = vmul.f32 %v2249, %v2235
        %v2253 = vmul.f32 %v2250, %v2240
        %v2254 = vmul.f32 %v2251, %v2232
        %v2255 = vmul.f32 %v2252, %v2235
        %v2256 = vmul.f32 %v2253, %v2240
        %v2257 = vadd.f32 %v2232, %v2254
        %v2258 = vadd.f32 %v2235, %v2255
        %v2259 = vadd.f32 %v2240, %v2256
        %v2260 = vmul.f32 %v2257, 0.7978846
        %v2261 = vmul.f32 %v2258, 0.7978846
        %v2262 = vmul.f32 %v2259, 0.7978846
        %v2263 = vtanh.pop %v2260
        %v2264 = vtanh.pop %v2261
        %v2265 = vtanh.pop %v2262
        %v2266 = vadd.f32 %v2263, 1.0
        %v2267 = vadd.f32 %v2264, 1.0
        %v2268 = vadd.f32 %v2265, 1.0
        %v2269 = vmul.f32 %v2245, %v2266
        %v2270 = vmul.f32 %v2246, %v2267
        %v2271 = vmul.f32 %v2247, %v2268
        %v2272 = vpack.c.bf16 %v2270, %v2269
        %v2273 = vpack.c.bf16 %v2271, %v2271
        %v2274 = vld [vmem:[%s945] sm:$0xf]
        %v2275 = vld [vmem:[%s945 + $0x4] sm:$0xf]
        %v2276 = vld [vmem:[%s945 + $0x8] sm:$0xf]
        %v2277 = vld [vmem:[%s945 + $0xc] sm:$0xf]
        %v2278 = vld [vmem:[%s945 + $0x10] sm:$0xf]
        %v2279 = vld [vmem:[%s945 + $0x14] sm:$0xf]
        %v2280 = vld [vmem:[%s945 + $0x18] sm:$0xf]
        %v2281 = vld [vmem:[%s945 + $0x1c] sm:$0xf]
        %v2282 = vld [vmem:[%s945 + $0x20] sm:$0xf]
        %v2283 = vld [vmem:[%s945 + $0x24] sm:$0xf]
        %v2284 = vld [vmem:[%s945 + $0x28] sm:$0xf]
        %v2285 = vld [vmem:[%s945 + $0x2c] sm:$0xf]
        %v2286 = vld [vmem:[%s945 + $0x30] sm:$0xf]
        %v2287 = vld [vmem:[%s945 + $0x34] sm:$0xf]
        %v2288 = vld [vmem:[%s945 + $0x38] sm:$0xf]
        %v2289 = vld [vmem:[%s945 + $0x3c] sm:$0xf]
        %v2290 = vld [vmem:[%s953] sm:$0x1]
        %v2292 = vlaneseq
        %v2293 = vshrl.u32 %v2292, 7
        %v2294 = vsub.s32 0, %v2293
        %v2295 = vrot.slane %v2290, %v2294
        %v2313 = vunpack.c.l.b16 %v2274
        %v2314 = vunpack.c.l.b16 %v2275
        %v2315 = vunpack.c.l.b16 %v2276
        %v2316 = vunpack.c.l.b16 %v2277
        %v2317 = vunpack.c.l.b16 %v2278
        %v2318 = vunpack.c.l.b16 %v2279
        %v2319 = vunpack.c.l.b16 %v2280
        %v2320 = vunpack.c.l.b16 %v2281
        %v2321 = vunpack.c.l.b16 %v2282
        %v2322 = vunpack.c.l.b16 %v2283
        %v2323 = vunpack.c.l.b16 %v2284
        %v2324 = vunpack.c.l.b16 %v2285
        %v2325 = vunpack.c.l.b16 %v2286
        %v2326 = vunpack.c.l.b16 %v2287
        %v2327 = vunpack.c.l.b16 %v2288
        %v2328 = vunpack.c.l.b16 %v2289
        %v2329 = vpack.c.b16 %v2314, %v2313
        %v2330 = vpack.c.b16 %v2316, %v2315
        %v2331 = vpack.c.b16 %v2318, %v2317
        %v2332 = vpack.c.b16 %v2320, %v2319
        %v2333 = vpack.c.b16 %v2322, %v2321
        %v2334 = vpack.c.b16 %v2324, %v2323
        %v2335 = vpack.c.b16 %v2326, %v2325
        %v2336 = vpack.c.b16 %v2328, %v2327
        %2345 = vmatprep.subr.bf16.mxu0 0
        %2346 = vmatpush1.bf16.msra.mxu0 %v2329
        %2347 = vmatprep.subr.bf16.mxu0 0
        %2348 = vmatpush1.bf16.msra.mxu0 %v2330
        %2349 = vmatprep.subr.bf16.mxu0 0
        %2350 = vmatpush1.bf16.msra.mxu0 %v2331
        %2351 = vmatprep.subr.bf16.mxu0 0
        %2352 = vmatpush1.bf16.msra.mxu0 %v2332
        %2353 = vmatprep.subr.bf16.mxu0 0
        %2354 = vmatpush1.bf16.msra.mxu0 %v2333
        %2355 = vmatprep.subr.bf16.mxu0 0
        %2356 = vmatpush1.bf16.msra.mxu0 %v2334
        %2357 = vmatprep.subr.bf16.mxu0 0
        %2358 = vmatpush1.bf16.msra.mxu0 %v2335
        %2359 = vmatprep.subr.bf16.mxu0 0
        %2360 = vmatpush1.bf16.msra.mxu0 %v2336
        %2361 = vmatprep.subr.bf16.mxu0 0
        %2362 = vmatpush1.bf16.msra.mxu0 0
        %2363 = vmatprep.subr.bf16.mxu0 0
        %2364 = vmatpush1.bf16.msra.mxu0 0
        %2365 = vmatprep.subr.bf16.mxu0 0
        %2366 = vmatpush1.bf16.msra.mxu0 0
        %2367 = vmatprep.subr.bf16.mxu0 0
        %2368 = vmatpush1.bf16.msra.mxu0 0
        %2369 = vmatprep.subr.bf16.mxu0 0
        %2370 = vmatpush1.bf16.msra.mxu0 0
        %2371 = vmatprep.subr.bf16.mxu0 0
        %2372 = vmatpush1.bf16.msra.mxu0 0
        %2373 = vmatprep.subr.bf16.mxu0 0
        %2374 = vmatpush1.bf16.msra.mxu0 0
        %2375 = vmatprep.subr.bf16.mxu0 0
        %2376 = vmatpush1.bf16.msra.mxu0 0
        %2377 = vmatprep.mubr.bf16.mxu0 0
        %2378 = vmatmul.mubr.bf16.gmra.mrb[0].mxu0 %v2272
        %v2379 = vpop.f32.mrb[0].mxu0
        %v2380 = vadd.f32 %v2295, %v2379
        %v2381 = vpop.f32.mrb[0].mxu0
        %v2382 = vpop.f32.mrb[0].mxu0
        %v2383 = vadd.f32 %v2295, %v2382
        %v2384 = vpop.f32.mrb[0].mxu0
        %2385 = vmatprep.mubr.bf16.mxu0 0
        %2386 = vmatmul.mubr.bf16.gmra.mrb[0].mxu0 %v2273
        %v2387 = vpop.f32.mrb[0].mxu0
        %v2388 = vadd.f32 %v2295, %v2387
        %v2389 = vpop.f32.mrb[0].mxu0
        %v2390 = vpop.f32.mrb[0].mxu0
        %v2391 = vpop.f32.mrb[0].mxu0
        %2392 = vdwg.mxu0
        %v2393 = vadd.f32 %v2104, %v2380
        %v2394 = vadd.f32 %v2105, %v2383
        %v2395 = vadd.f32 %v2106, %v2388
        %2396 = vst.msk [vmem:[#allocation2] sm:$0xff] %vm1173, %v2393
        %2397 = vst.msk [vmem:[#allocation2 + $0x8] sm:$0xff] %vm1173, %v2394
        %2398 = vst.msk [vmem:[#allocation2 + $0x10] sm:$0x1] %vm1180, %v2395
        %p2399 = scmp.eq.s32.totalorder %s42, 1
        // Predicated region
        $region169: #{tpu_custom_call.1} parent=91 // pred_check
          %p2400 = pneg %p2399
        $region170: #{tpu_custom_call.1} parent=91 // pred_check_branch
          %2402 = sbr.rel (%p2400) target = $region172
        $region171: #{tpu_custom_call.1} parent=91 // pred_region
          %v2403 = vld [vmem:[#allocation23] sm:$0x1]
          %v2404 = vld [vmem:[#allocation24] sm:$0x1]
          %v2405 = vsel %vm1173, %v2393, 0.0
          %2406 = vadd.xlane.f32.xlu0 %v2405
          %v2407 = vpop.xlane.xlu0 %2406
          %v2408 = vsel %vm1173, %v2394, 0.0
          %2409 = vadd.xlane.f32.xlu0 %v2408
          %v2410 = vpop.xlane.xlu0 %2409
          %v2411 = vsel %vm1180, %v2395, 0.0
          %2412 = vadd.xlane.f32.xlu0 %v2411
          %v2413 = vpop.xlane.xlu0 %2412
          %v2414 = vmul.f32 %v2407, %v1184
          %v2415 = vmul.f32 %v2410, %v1184
          %v2416 = vmul.f32 %v2413, %v1184
          %v2417 = vsub.f32 %v2393, %v2414
          %v2418 = vsub.f32 %v2394, %v2415
          %v2419 = vsub.f32 %v2395, %v2416
          %v2420 = vmul.f32 %v2417, %v2417
          %v2421 = vmul.f32 %v2418, %v2418
          %v2422 = vmul.f32 %v2419, %v2419
          %v2423 = vsel %vm1173, %v2420, 0.0
          %2424 = vadd.xlane.f32.xlu0 %v2423
          %v2425 = vpop.xlane.xlu0 %2424
          %v2426 = vsel %vm1173, %v2421, 0.0
          %2427 = vadd.xlane.f32.xlu0 %v2426
          %v2428 = vpop.xlane.xlu0 %2427
          %v2429 = vsel %vm1180, %v2422, 0.0
          %2430 = vadd.xlane.f32.xlu0 %v2429
          %v2431 = vpop.xlane.xlu0 %2430
          %v2432 = vmul.f32 %v2425, %v1184
          %v2433 = vmul.f32 %v2428, %v1184
          %v2434 = vmul.f32 %v2431, %v1184
          %v2435 = vadd.f32 %v2432, 1e-05
          %v2436 = vadd.f32 %v2433, 1e-05
          %v2437 = vadd.f32 %v2434, 1e-05
          %v2438 = vrsqrt.pop %v2435
          %v2439 = vrsqrt.pop %v2436
          %v2440 = vrsqrt.pop %v2437
          %v2441 = vmul.f32 %v2417, %v2438
          %v2442 = vmul.f32 %v2418, %v2439
          %v2443 = vmul.f32 %v2419, %v2440
          %v2445 = vlaneseq
          %v2446 = vshrl.u32 %v2445, 7
          %v2447 = vsub.s32 0, %v2446
          %v2448 = vrot.slane %v2403, %v2447
          %v2450 = vmul.f32 %v2441, %v2448
          %v2451 = vmul.f32 %v2442, %v2448
          %v2452 = vmul.f32 %v2443, %v2448
          %v2454 = vlaneseq
          %v2455 = vshrl.u32 %v2454, 7
          %v2456 = vsub.s32 0, %v2455
          %v2457 = vrot.slane %v2404, %v2456
          %v2459 = vadd.f32 %v2450, %v2457
          %v2460 = vadd.f32 %v2451, %v2457
          %v2461 = vadd.f32 %v2452, %v2457
          %2462 = vst.msk [vmem:[%s1065] sm:$0xff] %vm1173, %v2459
          %2463 = vst.msk [vmem:[%s1065 + $0x8] sm:$0xff] %vm1173, %v2460
          %2464 = vst.msk [vmem:[%s1065 + $0x10] sm:$0x1] %vm1180, %v2461
        $region172: #{tpu_custom_call.1} parent=91 // pred_fallthru
          _
        %s2465 = sand.u32 %s500, 1
        %s2466 = scalar_lea.sflag [#allocation5], %s2465
        %s2467 = sand.u32 %s500, 1
        %s2468 = smul.addr %s2467, 24
        %s2469 = scalar_lea.vmem [#allocation25], %s2468
        // Predicated region
        $region173: #{tpu_custom_call.1} parent=91 // pred_check
          %p2470 = pneg %p510
        $region174: #{tpu_custom_call.1} parent=91 // pred_check_branch
          %2472 = sbr.rel (%p2470) target = $region176
        $region175: #{tpu_custom_call.1} parent=91 // pred_region
          %s2474 = ssub.s32 384, 384
          %2475 = vsyncadd %s2466, %s2474
          %s2476 = smul.addr %s41, 3
          %s2477 = smul.addr %s2476, 128
          %s2478 = scalar_lea.hbm %s18, %s2477
          %s2479 = sshll.u32 %s2469, 4
          %s2480 = int_to_ptr.vmem [resolvable:$true] %s2479
          %2485 = dma.vmem_to_hbm [thread:$0]  %s2480, 384, %s2478, %s2466, 128, 128, 8
        $region176: #{tpu_custom_call.1} parent=91 // pred_fallthru
          _
      $region92: #{tpu_custom_call.1} parent=5 // pred_fallthru
        _
      %p2486 = scmp.le.s32.totalorder 2, %s32
      // Predicated region
      $region177: #{tpu_custom_call.1} parent=5 // pred_check
        %p2487 = pneg %p2486
      $region178: #{tpu_custom_call.1} parent=5 // pred_check_branch
        %2489 = sbr.rel (%p2487) target = $region180
      $region179: #{tpu_custom_call.1} parent=5 // pred_region
        %s2490 = ssub.s32 %s32, 2
        // Predicated region
        $region181: #{tpu_custom_call.1} parent=179 // pred_check
          %p2491 = pneg %p516
        $region182: #{tpu_custom_call.1} parent=179 // pred_check_branch
          %2493 = sbr.rel (%p2491) target = $region184
        $region183: #{tpu_custom_call.1} parent=179 // pred_region
          %s2494 = sand.u32 %s501, 1
          %s2495 = scalar_lea.sflag [#allocation5], %s2494
          %s2496 = sand.u32 %s501, 1
          %s2497 = smul.addr %s2496, 24
          %s2498 = scalar_lea.vmem [#allocation25], %s2497
          %2499 = dma.done %s2495, 384
        $region184: #{tpu_custom_call.1} parent=179 // pred_fallthru
          _
      $region180: #{tpu_custom_call.1} parent=5 // pred_fallthru
        _
    $region6: #{tpu_custom_call.1} parent=1 // loop_footer
      %s36 = sadd.s32 1, %s32
    $region7: #{tpu_custom_call.1} parent=1 // loop_footer_branch
      %31 = sbr.rel target = $region3
    $region8: #{tpu_custom_call.1} parent=1 // loop_exit
      _
    %2500 = vsyncpa [#allocation4], 1
    %s2501 = scalar_lea.sflag [#allocation4], 1
    %2502 = vsyncpa %s2501, 1
    %2503 = vsyncpa [#allocation7], 1
    %2504 = vsyncpa [#allocation10], 1
    %2505 = vsyncpa [#allocation5], 1
    %s2506 = scalar_lea.sflag [#allocation5], 1
    %2507 = vsyncpa %s2506, 1

</llo_original>
